<compile_context>
chip_gen: v7x
topology: tpu7x:2x2x1
jax: 0.10.0
libtpu: 0.0.40
codegen_flags: <defaults>
</compile_context>

<pallas_src>
import jax
import jax.numpy as jnp
from jax.experimental import pallas as pl
from jax.experimental.pallas import tpu as pltpu

LANE = 128
SUBLANE = 8


def _round_up(x, m):
    return ((x + m - 1) // m) * m


def _pad_to(a, shape):
    return jnp.pad(a, [(0, t - s) for s, t in zip(a.shape, shape)])


# --------------------------------------------------------------------------
# Single fused kernel: GIN stack (both branches) + pooling + proj head
# --------------------------------------------------------------------------
def _elu(h):
    # ELU(alpha=1): exp of the clamped negative part avoids Inf*0 NaNs and
    # keeps a single EUP transcendental per element.
    em1 = jnp.exp(jnp.minimum(h, 0.0)) - 1.0
    return jnp.where(h > 0.0, h, em1)


def _make_fused_kernel(num_layers):
    def kernel(adj_ref, x_ref, pool_ref, *args):
        out_ref = args[-1]
        pw1, pb1, pw2, pb2 = args[-5], args[-4], args[-3], args[-2]
        wrefs = args[:-5]                      # 4 refs per GIN layer

        pool2 = pool_ref[...]                  # [2G, Np] = [sum-pool; mean-pool]
        branch_z = []
        for b in range(2):                     # static unroll over (x, x_aug)
            adj = adj_ref[b]                   # [Np, Np]
            h = x_ref[b]                       # [Np, Fp]
            pooled = []
            for l in range(num_layers):        # static unroll over GIN layers
                w1 = wrefs[4 * l + 0][...]
                b1 = wrefs[4 * l + 1][...]
                w2 = wrefs[4 * l + 2][...]
                b2 = wrefs[4 * l + 3][...]
                agg = jnp.dot(adj, h, preferred_element_type=jnp.float32)
                t = jnp.dot(agg, w1, preferred_element_type=jnp.float32) + b1
                t = jnp.maximum(t, 0.0)
                t = jnp.dot(t, w2, preferred_element_type=jnp.float32) + b2
                h = jnp.maximum(t, 0.0)
                # pool this layer immediately: [2G, Hp] = [con_l ; sem_l]
                pooled.append(jnp.dot(pool2, h,
                                      preferred_element_type=jnp.float32))
            zb = pooled[0] if num_layers == 1 else jnp.concatenate(pooled, axis=1)
            branch_z.append(zb)                # [2G, Ein_p]

        z = jnp.concatenate(branch_z, axis=0)  # [4G, Ein_p]: con1,sem1,con2,sem2
        m_pad = out_ref.shape[0]
        if z.shape[0] < m_pad:                 # pad rows to sublane multiple
            z = jnp.concatenate(
                [z, jnp.zeros((m_pad - z.shape[0], z.shape[1]), jnp.float32)],
                axis=0)

        # Fused proj head: Linear -> ELU -> Linear, once over all rows.
        hp = jnp.dot(z, pw1[...], preferred_element_type=jnp.float32) + pb1[...]
        hp = _elu(hp)
        out_ref[...] = (jnp.dot(hp, pw2[...],
                                preferred_element_type=jnp.float32) + pb2[...])
    return kernel


def encode_and_project(adj2, x2, pool2, gin_padded, proj_padded):
    """adj2:[2,Np,Np], x2:[2,Np,Fp], pool2:[2G,Np] -> [M_pad, Eout_p]."""
    num_layers = len(gin_padded)
    two_g = pool2.shape[0]
    m_pad = _round_up(2 * two_g, SUBLANE)
    eout_p = proj_padded[2].shape[1]
    flat_w = [w for layer in gin_padded for w in layer]

    return pl.pallas_call(
        _make_fused_kernel(num_layers),
        out_shape=jax.ShapeDtypeStruct((m_pad, eout_p), jnp.float32),
    )(adj2, x2, pool2, *flat_w, *proj_padded)


# --------------------------------------------------------------------------
# Parameter setup (deterministic) + zero-padding to lane-dense shapes
# --------------------------------------------------------------------------
def init_params(key, num_features, hidden_dim, num_gc_layers):
    embedding_dim = hidden_dim * num_gc_layers
    params = {"gin_layers": [], "proj": {}}
    in_dim = num_features
    for _ in range(num_gc_layers):
        key, k1, k2 = jax.random.split(key, 3)
        w1 = jax.random.normal(k1, (in_dim, hidden_dim), jnp.float32) * 0.1
        b1 = jnp.zeros((1, hidden_dim), jnp.float32)
        w2 = jax.random.normal(k2, (hidden_dim, hidden_dim), jnp.float32) * 0.1
        b2 = jnp.zeros((1, hidden_dim), jnp.float32)
        params["gin_layers"].append((w1, b1, w2, b2))
        in_dim = hidden_dim
    key, k1, k2, k3, k4 = jax.random.split(key, 5)
    params["proj"] = {
        "w1": jax.random.normal(k1, (embedding_dim, embedding_dim), jnp.float32) * 0.1,
        "b1": jax.random.normal(k2, (1, embedding_dim), jnp.float32) * 0.01,
        "w2": jax.random.normal(k3, (embedding_dim, embedding_dim), jnp.float32) * 0.1,
        "b2": jax.random.normal(k4, (1, embedding_dim), jnp.float32) * 0.01,
    }
    return params


def pad_gin_params(params, num_features, hidden_dim):
    Fp = _round_up(num_features, LANE)
    Hp = _round_up(hidden_dim, LANE)
    padded = []
    in_dim_p = Fp
    for (w1, b1, w2, b2) in params["gin_layers"]:
        padded.append((_pad_to(w1, (in_dim_p, Hp)),
                       _pad_to(b1, (1, Hp)),
                       _pad_to(w2, (Hp, Hp)),
                       _pad_to(b2, (1, Hp))))
        in_dim_p = Hp
    return padded


def pad_proj_params(params, hidden_dim, num_gc_layers):
    E = hidden_dim * num_gc_layers
    Hp = _round_up(hidden_dim, LANE)
    Ein_p = num_gc_layers * Hp          # padded concat width fed by encoder
    Eout_p = _round_up(E, LANE)
    p = params["proj"]
    # Place the logical [E,E] first-linear weights at the padded row offsets of
    # each GIN layer's lane block; padded rows/cols stay exactly zero.
    w1p = jnp.zeros((Ein_p, Eout_p), jnp.float32)
    for l in range(num_gc_layers):
        w1p = w1p.at[l * Hp:l * Hp + hidden_dim, :E].set(
            p["w1"][l * hidden_dim:(l + 1) * hidden_dim, :])
    b1p = _pad_to(p["b1"], (1, Eout_p))
    w2p = _pad_to(p["w2"], (Eout_p, Eout_p))
    b2p = _pad_to(p["b2"], (1, Eout_p))
    return (w1p, b1p, w2p, b2p)


# --------------------------------------------------------------------------
# Graph glue (hoisted out of the forward path; computed once per graph batch)
# --------------------------------------------------------------------------
def dense_adj_with_self_loops(edge_index, id_mat, num_nodes):
    adj = jnp.zeros((num_nodes, num_nodes), jnp.float32)
    adj = adj.at[edge_index[0], edge_index[1]].set(1.0)   # unweighted adjacency
    return adj + id_mat                                   # self loops via id_mat


def prepare_inputs(x, x_aug, edge_index, aug_edge_index, id_mat, batch,
                   num_graphs):
    N, F = x.shape
    Np = _round_up(N, SUBLANE)
    Fp = _round_up(F, LANE)
    adj1 = dense_adj_with_self_loops(edge_index, id_mat, N)
    adj2_ = dense_adj_with_self_loops(aug_edge_index, id_mat, N)
    adj2 = jnp.stack([_pad_to(adj1, (Np, Np)), _pad_to(adj2_, (Np, Np))])
    x2 = jnp.stack([_pad_to(x, (Np, Fp)), _pad_to(x_aug, (Np, Fp))])
    pool = jax.nn.one_hot(batch, num_graphs, dtype=jnp.float32).T   # [G, N]
    counts = jnp.maximum(jnp.sum(pool, axis=1, keepdims=True), 1.0)
    pool_mean = pool / counts                                       # mean-pool
    pool2 = jnp.concatenate([pool, pool_mean], axis=0)              # [2G, N]
    pool2 = _pad_to(pool2, (2 * num_graphs, Np))
    return adj2, x2, pool2


# --------------------------------------------------------------------------
# Model forward (single pallas_call launch)
# --------------------------------------------------------------------------
def model_forward(gin_padded, proj_padded, adj2, x2, pool2, emb_dim):
    G = pool2.shape[0] // 2
    out = encode_and_project(adj2, x2, pool2, gin_padded, proj_padded)
    out = out[:4 * G, :emb_dim]               # strip row/lane padding
    con_x1 = out[0 * G:1 * G]
    sem_x1 = out[1 * G:2 * G]
    con_x2 = out[2 * G:3 * G]
    sem_x2 = out[3 * G:4 * G]
    return con_x1, con_x2, sem_x1, sem_x2


# --------------------------------------------------------------------------
# Demo
# --------------------------------------------------------------------------
if __name__ == "__main__":
    N = 8                   # total nodes
    NUM_FEATURES = 4        # dataset_num_features
    HIDDEN = 32
    NUM_GC_LAYERS = 2
    NUM_GRAPHS = 2
    EMB_DIM = HIDDEN * NUM_GC_LAYERS

    key = jax.random.PRNGKey(0)
    key, kx, kxa = jax.random.split(key, 3)
    x = jax.random.normal(kx, (N, NUM_FEATURES), jnp.float32)
    x_aug = jax.random.normal(kxa, (N, NUM_FEATURES), jnp.float32)

    # simple ring edges inside each 4-node graph (undirected: both directions)
    src = jnp.array([0, 1, 2, 3, 1, 2, 3, 0, 4, 5, 6, 7, 5, 6, 7, 4], jnp.int32)
    dst = jnp.array([1, 2, 3, 0, 0, 1, 2, 3, 5, 6, 7, 4, 4, 5, 6, 7], jnp.int32)
    edge_index = jnp.stack([src, dst])                    # [2, E]
    aug_edge_index = jnp.stack([src[::2], dst[::2]])      # drop half the edges

    id_mat = jnp.eye(N, dtype=jnp.float32)
    batch = jnp.array([0, 0, 0, 0, 1, 1, 1, 1], jnp.int32)

    params = init_params(jax.random.PRNGKey(0), NUM_FEATURES, HIDDEN,
                         NUM_GC_LAYERS)
    gin_padded = pad_gin_params(params, NUM_FEATURES, HIDDEN)
    proj_padded = pad_proj_params(params, HIDDEN, NUM_GC_LAYERS)

    # constant graph glue, built once (hoisted out of the forward path)
    adj2, x2, pool2 = prepare_inputs(x, x_aug, edge_index, aug_edge_index,
                                     id_mat, batch, NUM_GRAPHS)

    fwd = jax.jit(model_forward, static_argnums=(5,))
    con_x1, con_x2, sem_x1, sem_x2 = fwd(gin_padded, proj_padded, adj2, x2,
                                         pool2, EMB_DIM)

    for out in (con_x1, con_x2, sem_x1, sem_x2):
        jax.block_until_ready(out)
        assert out.shape == (NUM_GRAPHS, EMB_DIM)
        assert out.dtype == jnp.float32

    print("KERNEL_OK")
</pallas_src>

<mosaic_0001>
module attributes {stable_mosaic.version = 11 : i64} {
  func.func @kernel(%arg0: memref<2x8x8xf32, #tpu.memory_space<vmem>>, %arg1: memref<2x8x128xf32, #tpu.memory_space<vmem>>, %arg2: memref<4x8xf32, #tpu.memory_space<vmem>>, %arg3: memref<128x128xf32, #tpu.memory_space<vmem>>, %arg4: memref<1x128xf32, #tpu.memory_space<vmem>>, %arg5: memref<128x128xf32, #tpu.memory_space<vmem>>, %arg6: memref<1x128xf32, #tpu.memory_space<vmem>>, %arg7: memref<128x128xf32, #tpu.memory_space<vmem>>, %arg8: memref<1x128xf32, #tpu.memory_space<vmem>>, %arg9: memref<128x128xf32, #tpu.memory_space<vmem>>, %arg10: memref<1x128xf32, #tpu.memory_space<vmem>>, %arg11: memref<256x128xf32, #tpu.memory_space<vmem>>, %arg12: memref<1x128xf32, #tpu.memory_space<vmem>>, %arg13: memref<128x128xf32, #tpu.memory_space<vmem>>, %arg14: memref<1x128xf32, #tpu.memory_space<vmem>>, %arg15: memref<8x128xf32, #tpu.memory_space<vmem>>) attributes {dimension_semantics = [], scalar_prefetch = 0 : i64, scratch_operands = 0 : i64, tpu.core_type = #tpu.core_type<tc>} {
    %c0 = arith.constant 0 : index
    %c0_0 = arith.constant 0 : index
    %0 = vector.load %arg2[%c0, %c0_0] : memref<4x8xf32, #tpu.memory_space<vmem>>, vector<4x8xf32>
    %c0_1 = arith.constant 0 : index
    %c0_2 = arith.constant 0 : index
    %c0_3 = arith.constant 0 : index
    %1 = vector.load %arg0[%c0_1, %c0_2, %c0_3] : memref<2x8x8xf32, #tpu.memory_space<vmem>>, vector<1x8x8xf32>
    %2 = vector.shape_cast %1 : vector<1x8x8xf32> to vector<8x8xf32>
    %c0_4 = arith.constant 0 : index
    %c0_5 = arith.constant 0 : index
    %c0_6 = arith.constant 0 : index
    %3 = vector.load %arg1[%c0_4, %c0_5, %c0_6] : memref<2x8x128xf32, #tpu.memory_space<vmem>>, vector<1x8x128xf32>
    %4 = vector.shape_cast %3 : vector<1x8x128xf32> to vector<8x128xf32>
    %c0_7 = arith.constant 0 : index
    %c0_8 = arith.constant 0 : index
    %5 = vector.load %arg3[%c0_7, %c0_8] : memref<128x128xf32, #tpu.memory_space<vmem>>, vector<128x128xf32>
    %c0_9 = arith.constant 0 : index
    %c0_10 = arith.constant 0 : index
    %6 = vector.load %arg4[%c0_9, %c0_10] : memref<1x128xf32, #tpu.memory_space<vmem>>, vector<1x128xf32>
    %c0_11 = arith.constant 0 : index
    %c0_12 = arith.constant 0 : index
    %7 = vector.load %arg5[%c0_11, %c0_12] : memref<128x128xf32, #tpu.memory_space<vmem>>, vector<128x128xf32>
    %c0_13 = arith.constant 0 : index
    %c0_14 = arith.constant 0 : index
    %8 = vector.load %arg6[%c0_13, %c0_14] : memref<1x128xf32, #tpu.memory_space<vmem>>, vector<1x128xf32>
    %cst = arith.constant dense<0.000000e+00> : vector<8x128xf32>
    %9 = tpu.matmul %2, %4, %cst {dimension_numbers = #tpu.dot_dimension_numbers<[1], [0], [0], [1], [0, 0, 1, 1], [], []>} : vector<8x8xf32>, vector<8x128xf32>, vector<8x128xf32> -> vector<8x128xf32>
    %cst_15 = arith.constant dense<0.000000e+00> : vector<8x128xf32>
    %10 = tpu.matmul %9, %5, %cst_15 {dimension_numbers = #tpu.dot_dimension_numbers<[1], [0], [0], [1], [0, 0, 1, 1], [], []>} : vector<8x128xf32>, vector<128x128xf32>, vector<8x128xf32> -> vector<8x128xf32>
    %11 = vector.broadcast %6 : vector<1x128xf32> to vector<8x128xf32>
    %12 = arith.addf %10, %11 : vector<8x128xf32>
    %cst_16 = arith.constant 0.000000e+00 : f32
    %13 = vector.broadcast %cst_16 : f32 to vector<8x128xf32>
    %14 = arith.maximumf %12, %13 : vector<8x128xf32>
    %cst_17 = arith.constant dense<0.000000e+00> : vector<8x128xf32>
    %15 = tpu.matmul %14, %7, %cst_17 {dimension_numbers = #tpu.dot_dimension_numbers<[1], [0], [0], [1], [0, 0, 1, 1], [], []>} : vector<8x128xf32>, vector<128x128xf32>, vector<8x128xf32> -> vector<8x128xf32>
    %16 = vector.broadcast %8 : vector<1x128xf32> to vector<8x128xf32>
    %17 = arith.addf %15, %16 : vector<8x128xf32>
    %cst_18 = arith.constant 0.000000e+00 : f32
    %18 = vector.broadcast %cst_18 : f32 to vector<8x128xf32>
    %19 = arith.maximumf %17, %18 : vector<8x128xf32>
    %cst_19 = arith.constant dense<0.000000e+00> : vector<4x128xf32>
    %20 = tpu.matmul %0, %19, %cst_19 {dimension_numbers = #tpu.dot_dimension_numbers<[1], [0], [0], [1], [0, 0, 1, 1], [], []>} : vector<4x8xf32>, vector<8x128xf32>, vector<4x128xf32> -> vector<4x128xf32>
    %c0_20 = arith.constant 0 : index
    %c0_21 = arith.constant 0 : index
    %21 = vector.load %arg7[%c0_20, %c0_21] : memref<128x128xf32, #tpu.memory_space<vmem>>, vector<128x128xf32>
    %c0_22 = arith.constant 0 : index
    %c0_23 = arith.constant 0 : index
    %22 = vector.load %arg8[%c0_22, %c0_23] : memref<1x128xf32, #tpu.memory_space<vmem>>, vector<1x128xf32>
    %c0_24 = arith.constant 0 : index
    %c0_25 = arith.constant 0 : index
    %23 = vector.load %arg9[%c0_24, %c0_25] : memref<128x128xf32, #tpu.memory_space<vmem>>, vector<128x128xf32>
    %c0_26 = arith.constant 0 : index
    %c0_27 = arith.constant 0 : index
    %24 = vector.load %arg10[%c0_26, %c0_27] : memref<1x128xf32, #tpu.memory_space<vmem>>, vector<1x128xf32>
    %cst_28 = arith.constant dense<0.000000e+00> : vector<8x128xf32>
    %25 = tpu.matmul %2, %19, %cst_28 {dimension_numbers = #tpu.dot_dimension_numbers<[1], [0], [0], [1], [0, 0, 1, 1], [], []>} : vector<8x8xf32>, vector<8x128xf32>, vector<8x128xf32> -> vector<8x128xf32>
    %cst_29 = arith.constant dense<0.000000e+00> : vector<8x128xf32>
    %26 = tpu.matmul %25, %21, %cst_29 {dimension_numbers = #tpu.dot_dimension_numbers<[1], [0], [0], [1], [0, 0, 1, 1], [], []>} : vector<8x128xf32>, vector<128x128xf32>, vector<8x128xf32> -> vector<8x128xf32>
    %27 = vector.broadcast %22 : vector<1x128xf32> to vector<8x128xf32>
    %28 = arith.addf %26, %27 : vector<8x128xf32>
    %cst_30 = arith.constant 0.000000e+00 : f32
    %29 = vector.broadcast %cst_30 : f32 to vector<8x128xf32>
    %30 = arith.maximumf %28, %29 : vector<8x128xf32>
    %cst_31 = arith.constant dense<0.000000e+00> : vector<8x128xf32>
    %31 = tpu.matmul %30, %23, %cst_31 {dimension_numbers = #tpu.dot_dimension_numbers<[1], [0], [0], [1], [0, 0, 1, 1], [], []>} : vector<8x128xf32>, vector<128x128xf32>, vector<8x128xf32> -> vector<8x128xf32>
    %32 = vector.broadcast %24 : vector<1x128xf32> to vector<8x128xf32>
    %33 = arith.addf %31, %32 : vector<8x128xf32>
    %cst_32 = arith.constant 0.000000e+00 : f32
    %34 = vector.broadcast %cst_32 : f32 to vector<8x128xf32>
    %35 = arith.maximumf %33, %34 : vector<8x128xf32>
    %cst_33 = arith.constant dense<0.000000e+00> : vector<4x128xf32>
    %36 = tpu.matmul %0, %35, %cst_33 {dimension_numbers = #tpu.dot_dimension_numbers<[1], [0], [0], [1], [0, 0, 1, 1], [], []>} : vector<4x8xf32>, vector<8x128xf32>, vector<4x128xf32> -> vector<4x128xf32>
    %37 = tpu.concatenate %20, %36 in 1 : vector<4x128xf32>, vector<4x128xf32> -> vector<4x256xf32>
    %c1 = arith.constant 1 : index
    %c0_34 = arith.constant 0 : index
    %c0_35 = arith.constant 0 : index
    %38 = vector.load %arg0[%c1, %c0_34, %c0_35] : memref<2x8x8xf32, #tpu.memory_space<vmem>>, vector<1x8x8xf32>
    %39 = vector.shape_cast %38 : vector<1x8x8xf32> to vector<8x8xf32>
    %c1_36 = arith.constant 1 : index
    %c0_37 = arith.constant 0 : index
    %c0_38 = arith.constant 0 : index
    %40 = vector.load %arg1[%c1_36, %c0_37, %c0_38] : memref<2x8x128xf32, #tpu.memory_space<vmem>>, vector<1x8x128xf32>
    %41 = vector.shape_cast %40 : vector<1x8x128xf32> to vector<8x128xf32>
    %c0_39 = arith.constant 0 : index
    %c0_40 = arith.constant 0 : index
    %42 = vector.load %arg3[%c0_39, %c0_40] : memref<128x128xf32, #tpu.memory_space<vmem>>, vector<128x128xf32>
    %c0_41 = arith.constant 0 : index
    %c0_42 = arith.constant 0 : index
    %43 = vector.load %arg4[%c0_41, %c0_42] : memref<1x128xf32, #tpu.memory_space<vmem>>, vector<1x128xf32>
    %c0_43 = arith.constant 0 : index
    %c0_44 = arith.constant 0 : index
    %44 = vector.load %arg5[%c0_43, %c0_44] : memref<128x128xf32, #tpu.memory_space<vmem>>, vector<128x128xf32>
    %c0_45 = arith.constant 0 : index
    %c0_46 = arith.constant 0 : index
    %45 = vector.load %arg6[%c0_45, %c0_46] : memref<1x128xf32, #tpu.memory_space<vmem>>, vector<1x128xf32>
    %cst_47 = arith.constant dense<0.000000e+00> : vector<8x128xf32>
    %46 = tpu.matmul %39, %41, %cst_47 {dimension_numbers = #tpu.dot_dimension_numbers<[1], [0], [0], [1], [0, 0, 1, 1], [], []>} : vector<8x8xf32>, vector<8x128xf32>, vector<8x128xf32> -> vector<8x128xf32>
    %cst_48 = arith.constant dense<0.000000e+00> : vector<8x128xf32>
    %47 = tpu.matmul %46, %42, %cst_48 {dimension_numbers = #tpu.dot_dimension_numbers<[1], [0], [0], [1], [0, 0, 1, 1], [], []>} : vector<8x128xf32>, vector<128x128xf32>, vector<8x128xf32> -> vector<8x128xf32>
    %48 = vector.broadcast %43 : vector<1x128xf32> to vector<8x128xf32>
    %49 = arith.addf %47, %48 : vector<8x128xf32>
    %cst_49 = arith.constant 0.000000e+00 : f32
    %50 = vector.broadcast %cst_49 : f32 to vector<8x128xf32>
    %51 = arith.maximumf %49, %50 : vector<8x128xf32>
    %cst_50 = arith.constant dense<0.000000e+00> : vector<8x128xf32>
    %52 = tpu.matmul %51, %44, %cst_50 {dimension_numbers = #tpu.dot_dimension_numbers<[1], [0], [0], [1], [0, 0, 1, 1], [], []>} : vector<8x128xf32>, vector<128x128xf32>, vector<8x128xf32> -> vector<8x128xf32>
    %53 = vector.broadcast %45 : vector<1x128xf32> to vector<8x128xf32>
    %54 = arith.addf %52, %53 : vector<8x128xf32>
    %cst_51 = arith.constant 0.000000e+00 : f32
    %55 = vector.broadcast %cst_51 : f32 to vector<8x128xf32>
    %56 = arith.maximumf %54, %55 : vector<8x128xf32>
    %cst_52 = arith.constant dense<0.000000e+00> : vector<4x128xf32>
    %57 = tpu.matmul %0, %56, %cst_52 {dimension_numbers = #tpu.dot_dimension_numbers<[1], [0], [0], [1], [0, 0, 1, 1], [], []>} : vector<4x8xf32>, vector<8x128xf32>, vector<4x128xf32> -> vector<4x128xf32>
    %c0_53 = arith.constant 0 : index
    %c0_54 = arith.constant 0 : index
    %58 = vector.load %arg7[%c0_53, %c0_54] : memref<128x128xf32, #tpu.memory_space<vmem>>, vector<128x128xf32>
    %c0_55 = arith.constant 0 : index
    %c0_56 = arith.constant 0 : index
    %59 = vector.load %arg8[%c0_55, %c0_56] : memref<1x128xf32, #tpu.memory_space<vmem>>, vector<1x128xf32>
    %c0_57 = arith.constant 0 : index
    %c0_58 = arith.constant 0 : index
    %60 = vector.load %arg9[%c0_57, %c0_58] : memref<128x128xf32, #tpu.memory_space<vmem>>, vector<128x128xf32>
    %c0_59 = arith.constant 0 : index
    %c0_60 = arith.constant 0 : index
    %61 = vector.load %arg10[%c0_59, %c0_60] : memref<1x128xf32, #tpu.memory_space<vmem>>, vector<1x128xf32>
    %cst_61 = arith.constant dense<0.000000e+00> : vector<8x128xf32>
    %62 = tpu.matmul %39, %56, %cst_61 {dimension_numbers = #tpu.dot_dimension_numbers<[1], [0], [0], [1], [0, 0, 1, 1], [], []>} : vector<8x8xf32>, vector<8x128xf32>, vector<8x128xf32> -> vector<8x128xf32>
    %cst_62 = arith.constant dense<0.000000e+00> : vector<8x128xf32>
    %63 = tpu.matmul %62, %58, %cst_62 {dimension_numbers = #tpu.dot_dimension_numbers<[1], [0], [0], [1], [0, 0, 1, 1], [], []>} : vector<8x128xf32>, vector<128x128xf32>, vector<8x128xf32> -> vector<8x128xf32>
    %64 = vector.broadcast %59 : vector<1x128xf32> to vector<8x128xf32>
    %65 = arith.addf %63, %64 : vector<8x128xf32>
    %cst_63 = arith.constant 0.000000e+00 : f32
    %66 = vector.broadcast %cst_63 : f32 to vector<8x128xf32>
    %67 = arith.maximumf %65, %66 : vector<8x128xf32>
    %cst_64 = arith.constant dense<0.000000e+00> : vector<8x128xf32>
    %68 = tpu.matmul %67, %60, %cst_64 {dimension_numbers = #tpu.dot_dimension_numbers<[1], [0], [0], [1], [0, 0, 1, 1], [], []>} : vector<8x128xf32>, vector<128x128xf32>, vector<8x128xf32> -> vector<8x128xf32>
    %69 = vector.broadcast %61 : vector<1x128xf32> to vector<8x128xf32>
    %70 = arith.addf %68, %69 : vector<8x128xf32>
    %cst_65 = arith.constant 0.000000e+00 : f32
    %71 = vector.broadcast %cst_65 : f32 to vector<8x128xf32>
    %72 = arith.maximumf %70, %71 : vector<8x128xf32>
    %cst_66 = arith.constant dense<0.000000e+00> : vector<4x128xf32>
    %73 = tpu.matmul %0, %72, %cst_66 {dimension_numbers = #tpu.dot_dimension_numbers<[1], [0], [0], [1], [0, 0, 1, 1], [], []>} : vector<4x8xf32>, vector<8x128xf32>, vector<4x128xf32> -> vector<4x128xf32>
    %74 = tpu.concatenate %57, %73 in 1 : vector<4x128xf32>, vector<4x128xf32> -> vector<4x256xf32>
    %75 = tpu.concatenate %37, %74 in 0 : vector<4x256xf32>, vector<4x256xf32> -> vector<8x256xf32>
    %c0_67 = arith.constant 0 : index
    %c0_68 = arith.constant 0 : index
    %76 = vector.load %arg11[%c0_67, %c0_68] : memref<256x128xf32, #tpu.memory_space<vmem>>, vector<256x128xf32>
    %cst_69 = arith.constant dense<0.000000e+00> : vector<8x128xf32>
    %77 = tpu.matmul %75, %76, %cst_69 {dimension_numbers = #tpu.dot_dimension_numbers<[1], [0], [0], [1], [0, 0, 1, 1], [], []>} : vector<8x256xf32>, vector<256x128xf32>, vector<8x128xf32> -> vector<8x128xf32>
    %c0_70 = arith.constant 0 : index
    %c0_71 = arith.constant 0 : index
    %78 = vector.load %arg12[%c0_70, %c0_71] : memref<1x128xf32, #tpu.memory_space<vmem>>, vector<1x128xf32>
    %79 = vector.broadcast %78 : vector<1x128xf32> to vector<8x128xf32>
    %80 = arith.addf %77, %79 : vector<8x128xf32>
    %cst_72 = arith.constant 0.000000e+00 : f32
    %81 = vector.broadcast %cst_72 : f32 to vector<8x128xf32>
    %82 = arith.minimumf %80, %81 : vector<8x128xf32>
    %83 = math.exp %82 : vector<8x128xf32>
    %cst_73 = arith.constant 1.000000e+00 : f32
    %84 = vector.broadcast %cst_73 : f32 to vector<8x128xf32>
    %85 = arith.subf %83, %84 : vector<8x128xf32>
    %cst_74 = arith.constant 0.000000e+00 : f32
    %86 = vector.broadcast %cst_74 : f32 to vector<8x128xf32>
    %87 = arith.cmpf ogt, %80, %86 : vector<8x128xf32>
    %88 = arith.select %87, %80, %85 : vector<8x128xi1>, vector<8x128xf32>
    %c0_75 = arith.constant 0 : index
    %c0_76 = arith.constant 0 : index
    %89 = vector.load %arg13[%c0_75, %c0_76] : memref<128x128xf32, #tpu.memory_space<vmem>>, vector<128x128xf32>
    %cst_77 = arith.constant dense<0.000000e+00> : vector<8x128xf32>
    %90 = tpu.matmul %88, %89, %cst_77 {dimension_numbers = #tpu.dot_dimension_numbers<[1], [0], [0], [1], [0, 0, 1, 1], [], []>} : vector<8x128xf32>, vector<128x128xf32>, vector<8x128xf32> -> vector<8x128xf32>
    %c0_78 = arith.constant 0 : index
    %c0_79 = arith.constant 0 : index
    %91 = vector.load %arg14[%c0_78, %c0_79] : memref<1x128xf32, #tpu.memory_space<vmem>>, vector<1x128xf32>
    %92 = vector.broadcast %91 : vector<1x128xf32> to vector<8x128xf32>
    %93 = arith.addf %90, %92 : vector<8x128xf32>
    %c0_80 = arith.constant 0 : index
    %c0_81 = arith.constant 0 : index
    %94 = vector.load %arg15[%c0_80, %c0_81] : memref<8x128xf32, #tpu.memory_space<vmem>>, vector<8x128xf32>
    tpu.vector_store %arg15[%c0_80, %c0_81], %93 {strides = array<i32>} : memref<8x128xf32, #tpu.memory_space<vmem>>, vector<8x128xf32>,
    return
  }
}

</mosaic_0001>

<llo_original>
// kernel: model_forward.1
$region0: #{model_forward.1}
  #allocation0 [shape = 'u32[]', space=smem, size = 0x4, offset = 0x4, fixed_abs, tag = 'smem constant byte address 0x4 - core index']
  #allocation1 [shape = 'u32[144,128]{1,0:T(1,128)}', space=vmem, size = 0x12000, scoped, tag = 'internal scratch']
  %s0 = inlined_call_operand.vmem [shape: f32[2,8,8], index: 0, kind: input, shape index: {}]
  %s1 = inlined_call_operand.vmem [shape: f32[2,8,128], index: 1, kind: input, shape index: {}]
  %s2 = inlined_call_operand.vmem [shape: f32[4,8], index: 2, kind: input, shape index: {}]
  %s3 = inlined_call_operand.hbm [shape: f32[128,128], index: 3, kind: input, shape index: {}]
  %s4 = inlined_call_operand.vmem [shape: f32[1,128], index: 4, kind: input, shape index: {}]
  %s5 = inlined_call_operand.hbm [shape: f32[128,128], index: 5, kind: input, shape index: {}]
  %s6 = inlined_call_operand.hbm [shape: f32[1,128], index: 6, kind: input, shape index: {}]
  %s7 = inlined_call_operand.hbm [shape: f32[128,128], index: 7, kind: input, shape index: {}]
  %s8 = inlined_call_operand.hbm [shape: f32[1,128], index: 8, kind: input, shape index: {}]
  %s9 = inlined_call_operand.hbm [shape: f32[128,128], index: 9, kind: input, shape index: {}]
  %s10 = inlined_call_operand.hbm [shape: f32[1,128], index: 10, kind: input, shape index: {}]
  %s11 = inlined_call_operand.hbm [shape: f32[256,128], index: 11, kind: input, shape index: {}]
  %s12 = inlined_call_operand.hbm [shape: f32[1,128], index: 12, kind: input, shape index: {}]
  %s13 = inlined_call_operand.hbm [shape: f32[128,128], index: 13, kind: input, shape index: {}]
  %s14 = inlined_call_operand.vmem [shape: f32[1,128], index: 14, kind: input, shape index: {}]
  %s15 = inlined_call_operand.vmem [shape: f32[8,128], index: 15, kind: output, shape index: {}]
  %s16 = sld [smem:[#allocation0]]
  $region110: #{model_forward.1} parent=0
    _
  %s18 = ssub.s32 1, %s16
  %s19 = scalar_select 0, %s18, %s16
  $region1: #{model_forward.1} parent=0
    #allocation2 [shape = 'u8[65536]{0}', space=vmem, size = 0x10000, scoped, tag = 'input window, operand 3, single buffered']
    #allocation3 [shape = 's32[1]{0}', space=sflag, size = 0x4, scoped, tag = 'scoped memory for model_forward.1']
    #allocation4 [shape = 'u8[65536]{0}', space=vmem, size = 0x10000, scoped, tag = 'input window, operand 5, single buffered']
    #allocation5 [shape = 's32[1]{0}', space=sflag, size = 0x4, scoped, tag = 'scoped memory for model_forward.1']
    #allocation6 [shape = 'u8[512]{0}', space=vmem, size = 0x400, scoped, tag = 'input window, operand 6, single buffered']
    #allocation7 [shape = 'u8[65536]{0}', space=vmem, size = 0x10000, scoped, tag = 'input window, operand 7, single buffered']
    #allocation8 [shape = 's32[1]{0}', space=sflag, size = 0x4, scoped, tag = 'scoped memory for model_forward.1']
    #allocation9 [shape = 'u8[512]{0}', space=vmem, size = 0x400, scoped, tag = 'input window, operand 8, single buffered']
    #allocation10 [shape = 'u8[65536]{0}', space=vmem, size = 0x10000, scoped, tag = 'input window, operand 9, single buffered']
    #allocation11 [shape = 's32[1]{0}', space=sflag, size = 0x4, scoped, tag = 'scoped memory for model_forward.1']
    #allocation12 [shape = 'u8[512]{0}', space=vmem, size = 0x400, scoped, tag = 'input window, operand 10, single buffered']
    #allocation13 [shape = 'u8[131072]{0}', space=vmem, size = 0x20000, scoped, tag = 'input window, operand 11, single buffered']
    #allocation14 [shape = 's32[1]{0}', space=sflag, size = 0x4, scoped, tag = 'scoped memory for model_forward.1']
    #allocation15 [shape = 'u8[512]{0}', space=vmem, size = 0x400, scoped, tag = 'input window, operand 12, single buffered']
    #allocation16 [shape = 'u8[65536]{0}', space=vmem, size = 0x10000, scoped, tag = 'input window, operand 13, single buffered']
    #allocation17 [shape = 's32[1]{0}', space=sflag, size = 0x4, scoped, tag = 'scoped memory for model_forward.1']
    %20 = vsyncpa [#allocation3], 0
    %21 = vsyncpa [#allocation5], 0
    %22 = vsyncpa [#allocation8], 0
    %23 = vsyncpa [#allocation11], 0
    %24 = vsyncpa [#allocation14], 0
    %25 = vsyncpa [#allocation17], 0
    // Predicated region
    $region2: #{model_forward.1} parent=1 // pred_check
      _
    $region3: #{model_forward.1} parent=1 // pred_check_branch
      %27 = sbr.rel (0) target = $region5
    $region4: #{model_forward.1} parent=1 // pred_region
      _
    $region5: #{model_forward.1} parent=1 // pred_fallthru
      _
    // Predicated region
    $region6: #{model_forward.1} parent=1 // pred_check
      _
    $region7: #{model_forward.1} parent=1 // pred_check_branch
      %29 = sbr.rel (0) target = $region9
    $region8: #{model_forward.1} parent=1 // pred_region
      _
    $region9: #{model_forward.1} parent=1 // pred_fallthru
      _
    // Predicated region
    $region10: #{model_forward.1} parent=1 // pred_check
      _
    $region11: #{model_forward.1} parent=1 // pred_check_branch
      %31 = sbr.rel (0) target = $region13
    $region12: #{model_forward.1} parent=1 // pred_region
      _
    $region13: #{model_forward.1} parent=1 // pred_fallthru
      _
    // Predicated region
    $region14: #{model_forward.1} parent=1 // pred_check
      _
    $region15: #{model_forward.1} parent=1 // pred_check_branch
      %33 = sbr.rel (0) target = $region17
    $region16: #{model_forward.1} parent=1 // pred_region
      %s35 = ssub.s32 2048, 2048
      %36 = vsyncadd [#allocation3], %s35
      %s37 = sshll.u32 [#allocation2], 4
      %s38 = int_to_ptr.vmem [resolvable:$true] %s37
      %43 = dma.hbm_to_vmem [thread:$0]  %s3, 2048, %s38, [#allocation3], 128, 128, 8
    $region17: #{model_forward.1} parent=1 // pred_fallthru
      _
    // Predicated region
    $region18: #{model_forward.1} parent=1 // pred_check
      _
    $region19: #{model_forward.1} parent=1 // pred_check_branch
      %45 = sbr.rel (0) target = $region21
    $region20: #{model_forward.1} parent=1 // pred_region
      _
    $region21: #{model_forward.1} parent=1 // pred_fallthru
      _
    // Predicated region
    $region22: #{model_forward.1} parent=1 // pred_check
      _
    $region23: #{model_forward.1} parent=1 // pred_check_branch
      %47 = sbr.rel (0) target = $region25
    $region24: #{model_forward.1} parent=1 // pred_region
      %s49 = ssub.s32 2048, 2048
      %50 = vsyncadd [#allocation5], %s49
      %s51 = sshll.u32 [#allocation4], 4
      %s52 = int_to_ptr.vmem [resolvable:$true] %s51
      %57 = dma.hbm_to_vmem [thread:$0]  %s5, 2048, %s52, [#allocation5], 128, 128, 8
    $region25: #{model_forward.1} parent=1 // pred_fallthru
      _
    // Predicated region
    $region26: #{model_forward.1} parent=1 // pred_check
      _
    $region27: #{model_forward.1} parent=1 // pred_check_branch
      %59 = sbr.rel (0) target = $region29
    $region28: #{model_forward.1} parent=1 // pred_region
      %s61 = ssub.s32 16, 16
      %62 = vsyncadd [#allocation5], %s61
      %s64 = sshll.u32 [#allocation6], 4
      %s65 = int_to_ptr.vmem [resolvable:$true] %s64
      %67 = dma.hbm_to_vmem [thread:$0]  %s6, 16, %s65, [#allocation5]
    $region29: #{model_forward.1} parent=1 // pred_fallthru
      _
    // Predicated region
    $region30: #{model_forward.1} parent=1 // pred_check
      _
    $region31: #{model_forward.1} parent=1 // pred_check_branch
      %69 = sbr.rel (0) target = $region33
    $region32: #{model_forward.1} parent=1 // pred_region
      %s71 = ssub.s32 2048, 2048
      %72 = vsyncadd [#allocation8], %s71
      %s73 = sshll.u32 [#allocation7], 4
      %s74 = int_to_ptr.vmem [resolvable:$true] %s73
      %79 = dma.hbm_to_vmem [thread:$0]  %s7, 2048, %s74, [#allocation8], 128, 128, 8
    $region33: #{model_forward.1} parent=1 // pred_fallthru
      _
    // Predicated region
    $region34: #{model_forward.1} parent=1 // pred_check
      _
    $region35: #{model_forward.1} parent=1 // pred_check_branch
      %81 = sbr.rel (0) target = $region37
    $region36: #{model_forward.1} parent=1 // pred_region
      %s83 = ssub.s32 16, 16
      %84 = vsyncadd [#allocation8], %s83
      %s86 = sshll.u32 [#allocation9], 4
      %s87 = int_to_ptr.vmem [resolvable:$true] %s86
      %89 = dma.hbm_to_vmem [thread:$0]  %s8, 16, %s87, [#allocation8]
    $region37: #{model_forward.1} parent=1 // pred_fallthru
      _
    // Predicated region
    $region38: #{model_forward.1} parent=1 // pred_check
      _
    $region39: #{model_forward.1} parent=1 // pred_check_branch
      %91 = sbr.rel (0) target = $region41
    $region40: #{model_forward.1} parent=1 // pred_region
      %s93 = ssub.s32 2048, 2048
      %94 = vsyncadd [#allocation11], %s93
      %s95 = sshll.u32 [#allocation10], 4
      %s96 = int_to_ptr.vmem [resolvable:$true] %s95
      %101 = dma.hbm_to_vmem [thread:$0]  %s9, 2048, %s96, [#allocation11], 128, 128, 8
    $region41: #{model_forward.1} parent=1 // pred_fallthru
      _
    // Predicated region
    $region42: #{model_forward.1} parent=1 // pred_check
      _
    $region43: #{model_forward.1} parent=1 // pred_check_branch
      %103 = sbr.rel (0) target = $region45
    $region44: #{model_forward.1} parent=1 // pred_region
      %s105 = ssub.s32 16, 16
      %106 = vsyncadd [#allocation11], %s105
      %s108 = sshll.u32 [#allocation12], 4
      %s109 = int_to_ptr.vmem [resolvable:$true] %s108
      %111 = dma.hbm_to_vmem [thread:$0]  %s10, 16, %s109, [#allocation11]
    $region45: #{model_forward.1} parent=1 // pred_fallthru
      _
    // Predicated region
    $region46: #{model_forward.1} parent=1 // pred_check
      _
    $region47: #{model_forward.1} parent=1 // pred_check_branch
      %113 = sbr.rel (0) target = $region49
    $region48: #{model_forward.1} parent=1 // pred_region
      %s115 = ssub.s32 4096, 4096
      %116 = vsyncadd [#allocation14], %s115
      %s117 = sshll.u32 [#allocation13], 4
      %s118 = int_to_ptr.vmem [resolvable:$true] %s117
      %123 = dma.hbm_to_vmem [thread:$0]  %s11, 4096, %s118, [#allocation14], 128, 128, 8
    $region49: #{model_forward.1} parent=1 // pred_fallthru
      _
    // Predicated region
    $region50: #{model_forward.1} parent=1 // pred_check
      _
    $region51: #{model_forward.1} parent=1 // pred_check_branch
      %125 = sbr.rel (0) target = $region53
    $region52: #{model_forward.1} parent=1 // pred_region
      %s127 = ssub.s32 16, 16
      %128 = vsyncadd [#allocation14], %s127
      %s130 = sshll.u32 [#allocation15], 4
      %s131 = int_to_ptr.vmem [resolvable:$true] %s130
      %133 = dma.hbm_to_vmem [thread:$0]  %s12, 16, %s131, [#allocation14]
    $region53: #{model_forward.1} parent=1 // pred_fallthru
      _
    // Predicated region
    $region54: #{model_forward.1} parent=1 // pred_check
      _
    $region55: #{model_forward.1} parent=1 // pred_check_branch
      %135 = sbr.rel (0) target = $region57
    $region56: #{model_forward.1} parent=1 // pred_region
      %s137 = ssub.s32 2048, 2048
      %138 = vsyncadd [#allocation17], %s137
      %s139 = sshll.u32 [#allocation16], 4
      %s140 = int_to_ptr.vmem [resolvable:$true] %s139
      %145 = dma.hbm_to_vmem [thread:$0]  %s13, 2048, %s140, [#allocation17], 128, 128, 8
    $region57: #{model_forward.1} parent=1 // pred_fallthru
      _
    // Predicated region
    $region58: #{model_forward.1} parent=1 // pred_check
      _
    $region59: #{model_forward.1} parent=1 // pred_check_branch
      %147 = sbr.rel (0) target = $region61
    $region60: #{model_forward.1} parent=1 // pred_region
      _
    $region61: #{model_forward.1} parent=1 // pred_fallthru
      _
    // Predicated region
    $region62: #{model_forward.1} parent=1 // pred_check
      _
    $region63: #{model_forward.1} parent=1 // pred_check_branch
      %149 = sbr.rel (0) target = $region65
    $region64: #{model_forward.1} parent=1 // pred_region
      %150 = dma.done [#allocation3], 2048
    $region65: #{model_forward.1} parent=1 // pred_fallthru
      _
    // Predicated region
    $region66: #{model_forward.1} parent=1 // pred_check
      _
    $region67: #{model_forward.1} parent=1 // pred_check_branch
      %152 = sbr.rel (0) target = $region69
    $region68: #{model_forward.1} parent=1 // pred_region
      %153 = dma.done [#allocation5], 2048
    $region69: #{model_forward.1} parent=1 // pred_fallthru
      _
    // Predicated region
    $region70: #{model_forward.1} parent=1 // pred_check
      _
    $region71: #{model_forward.1} parent=1 // pred_check_branch
      %155 = sbr.rel (0) target = $region73
    $region72: #{model_forward.1} parent=1 // pred_region
      %156 = dma.done [#allocation5], 16
    $region73: #{model_forward.1} parent=1 // pred_fallthru
      _
    // Predicated region
    $region74: #{model_forward.1} parent=1 // pred_check
      _
    $region75: #{model_forward.1} parent=1 // pred_check_branch
      %158 = sbr.rel (0) target = $region77
    $region76: #{model_forward.1} parent=1 // pred_region
      %159 = dma.done [#allocation8], 2048
    $region77: #{model_forward.1} parent=1 // pred_fallthru
      _
    // Predicated region
    $region78: #{model_forward.1} parent=1 // pred_check
      _
    $region79: #{model_forward.1} parent=1 // pred_check_branch
      %161 = sbr.rel (0) target = $region81
    $region80: #{model_forward.1} parent=1 // pred_region
      %162 = dma.done [#allocation8], 16
    $region81: #{model_forward.1} parent=1 // pred_fallthru
      _
    // Predicated region
    $region82: #{model_forward.1} parent=1 // pred_check
      _
    $region83: #{model_forward.1} parent=1 // pred_check_branch
      %164 = sbr.rel (0) target = $region85
    $region84: #{model_forward.1} parent=1 // pred_region
      %165 = dma.done [#allocation11], 2048
    $region85: #{model_forward.1} parent=1 // pred_fallthru
      _
    // Predicated region
    $region86: #{model_forward.1} parent=1 // pred_check
      _
    $region87: #{model_forward.1} parent=1 // pred_check_branch
      %167 = sbr.rel (0) target = $region89
    $region88: #{model_forward.1} parent=1 // pred_region
      %168 = dma.done [#allocation11], 16
    $region89: #{model_forward.1} parent=1 // pred_fallthru
      _
    // Predicated region
    $region90: #{model_forward.1} parent=1 // pred_check
      _
    $region91: #{model_forward.1} parent=1 // pred_check_branch
      %170 = sbr.rel (0) target = $region93
    $region92: #{model_forward.1} parent=1 // pred_region
      %171 = dma.done [#allocation14], 4096
    $region93: #{model_forward.1} parent=1 // pred_fallthru
      _
    // Predicated region
    $region94: #{model_forward.1} parent=1 // pred_check
      _
    $region95: #{model_forward.1} parent=1 // pred_check_branch
      %173 = sbr.rel (0) target = $region97
    $region96: #{model_forward.1} parent=1 // pred_region
      %174 = dma.done [#allocation14], 16
    $region97: #{model_forward.1} parent=1 // pred_fallthru
      _
    // Predicated region
    $region98: #{model_forward.1} parent=1 // pred_check
      _
    $region99: #{model_forward.1} parent=1 // pred_check_branch
      %176 = sbr.rel (0) target = $region101
    $region100: #{model_forward.1} parent=1 // pred_region
      %177 = dma.done [#allocation17], 2048
    $region101: #{model_forward.1} parent=1 // pred_fallthru
      _
    %v178 = vld [vmem:[%s2] sm:$0xf]
    %v179 = vld [vmem:[%s0] sm:$0xff]
    %v180 = vld [vmem:[%s1] sm:$0xff]
    %v181 = vld [vmem:[#allocation2] sm:$0xff]
    %v182 = vld [vmem:[#allocation2 + $0x8] sm:$0xff]
    %v183 = vld [vmem:[#allocation2 + $0x10] sm:$0xff]
    %v184 = vld [vmem:[#allocation2 + $0x18] sm:$0xff]
    %v185 = vld [vmem:[#allocation2 + $0x20] sm:$0xff]
    %v186 = vld [vmem:[#allocation2 + $0x28] sm:$0xff]
    %v187 = vld [vmem:[#allocation2 + $0x30] sm:$0xff]
    %v188 = vld [vmem:[#allocation2 + $0x38] sm:$0xff]
    %v189 = vld [vmem:[#allocation2 + $0x40] sm:$0xff]
    %v190 = vld [vmem:[#allocation2 + $0x48] sm:$0xff]
    %v191 = vld [vmem:[#allocation2 + $0x50] sm:$0xff]
    %v192 = vld [vmem:[#allocation2 + $0x58] sm:$0xff]
    %v193 = vld [vmem:[#allocation2 + $0x60] sm:$0xff]
    %v194 = vld [vmem:[#allocation2 + $0x68] sm:$0xff]
    %v195 = vld [vmem:[#allocation2 + $0x70] sm:$0xff]
    %v196 = vld [vmem:[#allocation2 + $0x78] sm:$0xff]
    %v197 = vld [vmem:[%s4] sm:$0x1]
    %v198 = vld [vmem:[#allocation4] sm:$0xff]
    %v199 = vld [vmem:[#allocation4 + $0x8] sm:$0xff]
    %v200 = vld [vmem:[#allocation4 + $0x10] sm:$0xff]
    %v201 = vld [vmem:[#allocation4 + $0x18] sm:$0xff]
    %v202 = vld [vmem:[#allocation4 + $0x20] sm:$0xff]
    %v203 = vld [vmem:[#allocation4 + $0x28] sm:$0xff]
    %v204 = vld [vmem:[#allocation4 + $0x30] sm:$0xff]
    %v205 = vld [vmem:[#allocation4 + $0x38] sm:$0xff]
    %v206 = vld [vmem:[#allocation4 + $0x40] sm:$0xff]
    %v207 = vld [vmem:[#allocation4 + $0x48] sm:$0xff]
    %v208 = vld [vmem:[#allocation4 + $0x50] sm:$0xff]
    %v209 = vld [vmem:[#allocation4 + $0x58] sm:$0xff]
    %v210 = vld [vmem:[#allocation4 + $0x60] sm:$0xff]
    %v211 = vld [vmem:[#allocation4 + $0x68] sm:$0xff]
    %v212 = vld [vmem:[#allocation4 + $0x70] sm:$0xff]
    %v213 = vld [vmem:[#allocation4 + $0x78] sm:$0xff]
    %v214 = vld [vmem:[#allocation6] sm:$0x1]
    %vm215 = vcmask 64512
    %v217 = vsel %vm215, %v179, 0
    %219 = vmatprep.subr.mxu0 0.0
    %220 = vmatpush1.msra.mxu0 %v180
    %221 = vmatprep.subr.mxu0 0.0
    %222 = vmatpush1.msra.mxu0 0.0
    %223 = vmatprep.subr.mxu0 0.0
    %224 = vmatpush1.msra.mxu0 0.0
    %225 = vmatprep.subr.mxu0 0.0
    %226 = vmatpush1.msra.mxu0 0.0
    %227 = vmatprep.subr.mxu0 0.0
    %228 = vmatpush1.msra.mxu0 0.0
    %229 = vmatprep.subr.mxu0 0.0
    %230 = vmatpush1.msra.mxu0 0.0
    %231 = vmatprep.subr.mxu0 0.0
    %232 = vmatpush1.msra.mxu0 0.0
    %233 = vmatprep.subr.mxu0 0.0
    %234 = vmatpush1.msra.mxu0 0.0
    %235 = vmatprep.subr.mxu0 0.0
    %236 = vmatpush1.msra.mxu0 0.0
    %237 = vmatprep.subr.mxu0 0.0
    %238 = vmatpush1.msra.mxu0 0.0
    %239 = vmatprep.subr.mxu0 0.0
    %240 = vmatpush1.msra.mxu0 0.0
    %241 = vmatprep.subr.mxu0 0.0
    %242 = vmatpush1.msra.mxu0 0.0
    %243 = vmatprep.subr.mxu0 0.0
    %244 = vmatpush1.msra.mxu0 0.0
    %245 = vmatprep.subr.mxu0 0.0
    %246 = vmatpush1.msra.mxu0 0.0
    %247 = vmatprep.subr.mxu0 0.0
    %248 = vmatpush1.msra.mxu0 0.0
    %249 = vmatprep.subr.mxu0 0.0
    %250 = vmatpush1.msra.mxu0 0.0
    %251 = vmatprep.subr.mxu0 0.0
    %252 = vmatpush1.msra.mxu0 0.0
    %253 = vmatprep.subr.mxu0 0.0
    %254 = vmatpush1.msra.mxu0 0.0
    %255 = vmatprep.subr.mxu0 0.0
    %256 = vmatpush1.msra.mxu0 0.0
    %257 = vmatprep.subr.mxu0 0.0
    %258 = vmatpush1.msra.mxu0 0.0
    %259 = vmatprep.subr.mxu0 0.0
    %260 = vmatpush1.msra.mxu0 0.0
    %261 = vmatprep.subr.mxu0 0.0
    %262 = vmatpush1.msra.mxu0 0.0
    %263 = vmatprep.subr.mxu0 0.0
    %264 = vmatpush1.msra.mxu0 0.0
    %265 = vmatprep.subr.mxu0 0.0
    %266 = vmatpush1.msra.mxu0 0.0
    %267 = vmatprep.subr.mxu0 0.0
    %268 = vmatpush1.msra.mxu0 0.0
    %269 = vmatprep.subr.mxu0 0.0
    %270 = vmatpush1.msra.mxu0 0.0
    %271 = vmatprep.subr.mxu0 0.0
    %272 = vmatpush1.msra.mxu0 0.0
    %273 = vmatprep.subr.mxu0 0.0
    %274 = vmatpush1.msra.mxu0 0.0
    %275 = vmatprep.subr.mxu0 0.0
    %276 = vmatpush1.msra.mxu0 0.0
    %277 = vmatprep.subr.mxu0 0.0
    %278 = vmatpush1.msra.mxu0 0.0
    %279 = vmatprep.subr.mxu0 0.0
    %280 = vmatpush1.msra.mxu0 0.0
    %281 = vmatprep.subr.mxu0 0.0
    %282 = vmatpush1.msra.mxu0 0.0
    %283 = vmatprep.mubr.f32.mxu0 0.0
    %284 = vmatmul.mubr.f32.gmra.mrb[0].mxu0 %v217
    %v285 = vpop.f32.mrb[0].mxu0
    %v286 = vadd.f32 0.0, %v285
    %v287 = vpop.f32.mrb[0].mxu0
    %288 = vdwg.mxu0
    %v290 = vlaneseq
    %v291 = vshrl.u32 %v290, 7
    %v292 = vsub.s32 0, %v291
    %v293 = vrot.slane %v197, %v292
    %295 = vmatprep.subr.mxu0 0.0
    %296 = vmatpush1.msra.mxu0 %v181
    %297 = vmatprep.subr.mxu0 0.0
    %298 = vmatpush1.msra.mxu0 %v182
    %299 = vmatprep.subr.mxu0 0.0
    %300 = vmatpush1.msra.mxu0 %v183
    %301 = vmatprep.subr.mxu0 0.0
    %302 = vmatpush1.msra.mxu0 %v184
    %303 = vmatprep.subr.mxu0 0.0
    %304 = vmatpush1.msra.mxu0 %v185
    %305 = vmatprep.subr.mxu0 0.0
    %306 = vmatpush1.msra.mxu0 %v186
    %307 = vmatprep.subr.mxu0 0.0
    %308 = vmatpush1.msra.mxu0 %v187
    %309 = vmatprep.subr.mxu0 0.0
    %310 = vmatpush1.msra.mxu0 %v188
    %311 = vmatprep.subr.mxu0 0.0
    %312 = vmatpush1.msra.mxu0 %v189
    %313 = vmatprep.subr.mxu0 0.0
    %314 = vmatpush1.msra.mxu0 %v190
    %315 = vmatprep.subr.mxu0 0.0
    %316 = vmatpush1.msra.mxu0 %v191
    %317 = vmatprep.subr.mxu0 0.0
    %318 = vmatpush1.msra.mxu0 %v192
    %319 = vmatprep.subr.mxu0 0.0
    %320 = vmatpush1.msra.mxu0 %v193
    %321 = vmatprep.subr.mxu0 0.0
    %322 = vmatpush1.msra.mxu0 %v194
    %323 = vmatprep.subr.mxu0 0.0
    %324 = vmatpush1.msra.mxu0 %v195
    %325 = vmatprep.subr.mxu0 0.0
    %326 = vmatpush1.msra.mxu0 %v196
    %327 = vmatprep.subr.mxu0 0.0
    %328 = vmatpush1.msra.mxu0 0.0
    %329 = vmatprep.subr.mxu0 0.0
    %330 = vmatpush1.msra.mxu0 0.0
    %331 = vmatprep.subr.mxu0 0.0
    %332 = vmatpush1.msra.mxu0 0.0
    %333 = vmatprep.subr.mxu0 0.0
    %334 = vmatpush1.msra.mxu0 0.0
    %335 = vmatprep.subr.mxu0 0.0
    %336 = vmatpush1.msra.mxu0 0.0
    %337 = vmatprep.subr.mxu0 0.0
    %338 = vmatpush1.msra.mxu0 0.0
    %339 = vmatprep.subr.mxu0 0.0
    %340 = vmatpush1.msra.mxu0 0.0
    %341 = vmatprep.subr.mxu0 0.0
    %342 = vmatpush1.msra.mxu0 0.0
    %343 = vmatprep.subr.mxu0 0.0
    %344 = vmatpush1.msra.mxu0 0.0
    %345 = vmatprep.subr.mxu0 0.0
    %346 = vmatpush1.msra.mxu0 0.0
    %347 = vmatprep.subr.mxu0 0.0
    %348 = vmatpush1.msra.mxu0 0.0
    %349 = vmatprep.subr.mxu0 0.0
    %350 = vmatpush1.msra.mxu0 0.0
    %351 = vmatprep.subr.mxu0 0.0
    %352 = vmatpush1.msra.mxu0 0.0
    %353 = vmatprep.subr.mxu0 0.0
    %354 = vmatpush1.msra.mxu0 0.0
    %355 = vmatprep.subr.mxu0 0.0
    %356 = vmatpush1.msra.mxu0 0.0
    %357 = vmatprep.subr.mxu0 0.0
    %358 = vmatpush1.msra.mxu0 0.0
    %359 = vmatprep.mubr.f32.mxu0 0.0
    %360 = vmatmul.mubr.f32.gmra.mrb[0].mxu0 %v286
    %v361 = vpop.f32.mrb[0].mxu0
    %v362 = vadd.f32 %v293, %v361
    %v363 = vpop.f32.mrb[0].mxu0
    %364 = vdwg.mxu0
    %v365 = vmax.f32 %v362, 0.0
    %v367 = vlaneseq
    %v368 = vshrl.u32 %v367, 7
    %v369 = vsub.s32 0, %v368
    %v370 = vrot.slane %v214, %v369
    %372 = vmatprep.subr.mxu0 0.0
    %373 = vmatpush1.msra.mxu0 %v198
    %374 = vmatprep.subr.mxu0 0.0
    %375 = vmatpush1.msra.mxu0 %v199
    %376 = vmatprep.subr.mxu0 0.0
    %377 = vmatpush1.msra.mxu0 %v200
    %378 = vmatprep.subr.mxu0 0.0
    %379 = vmatpush1.msra.mxu0 %v201
    %380 = vmatprep.subr.mxu0 0.0
    %381 = vmatpush1.msra.mxu0 %v202
    %382 = vmatprep.subr.mxu0 0.0
    %383 = vmatpush1.msra.mxu0 %v203
    %384 = vmatprep.subr.mxu0 0.0
    %385 = vmatpush1.msra.mxu0 %v204
    %386 = vmatprep.subr.mxu0 0.0
    %387 = vmatpush1.msra.mxu0 %v205
    %388 = vmatprep.subr.mxu0 0.0
    %389 = vmatpush1.msra.mxu0 %v206
    %390 = vmatprep.subr.mxu0 0.0
    %391 = vmatpush1.msra.mxu0 %v207
    %392 = vmatprep.subr.mxu0 0.0
    %393 = vmatpush1.msra.mxu0 %v208
    %394 = vmatprep.subr.mxu0 0.0
    %395 = vmatpush1.msra.mxu0 %v209
    %396 = vmatprep.subr.mxu0 0.0
    %397 = vmatpush1.msra.mxu0 %v210
    %398 = vmatprep.subr.mxu0 0.0
    %399 = vmatpush1.msra.mxu0 %v211
    %400 = vmatprep.subr.mxu0 0.0
    %401 = vmatpush1.msra.mxu0 %v212
    %402 = vmatprep.subr.mxu0 0.0
    %403 = vmatpush1.msra.mxu0 %v213
    %404 = vmatprep.subr.mxu0 0.0
    %405 = vmatpush1.msra.mxu0 0.0
    %406 = vmatprep.subr.mxu0 0.0
    %407 = vmatpush1.msra.mxu0 0.0
    %408 = vmatprep.subr.mxu0 0.0
    %409 = vmatpush1.msra.mxu0 0.0
    %410 = vmatprep.subr.mxu0 0.0
    %411 = vmatpush1.msra.mxu0 0.0
    %412 = vmatprep.subr.mxu0 0.0
    %413 = vmatpush1.msra.mxu0 0.0
    %414 = vmatprep.subr.mxu0 0.0
    %415 = vmatpush1.msra.mxu0 0.0
    %416 = vmatprep.subr.mxu0 0.0
    %417 = vmatpush1.msra.mxu0 0.0
    %418 = vmatprep.subr.mxu0 0.0
    %419 = vmatpush1.msra.mxu0 0.0
    %420 = vmatprep.subr.mxu0 0.0
    %421 = vmatpush1.msra.mxu0 0.0
    %422 = vmatprep.subr.mxu0 0.0
    %423 = vmatpush1.msra.mxu0 0.0
    %424 = vmatprep.subr.mxu0 0.0
    %425 = vmatpush1.msra.mxu0 0.0
    %426 = vmatprep.subr.mxu0 0.0
    %427 = vmatpush1.msra.mxu0 0.0
    %428 = vmatprep.subr.mxu0 0.0
    %429 = vmatpush1.msra.mxu0 0.0
    %430 = vmatprep.subr.mxu0 0.0
    %431 = vmatpush1.msra.mxu0 0.0
    %432 = vmatprep.subr.mxu0 0.0
    %433 = vmatpush1.msra.mxu0 0.0
    %434 = vmatprep.subr.mxu0 0.0
    %435 = vmatpush1.msra.mxu0 0.0
    %436 = vmatprep.mubr.f32.mxu0 0.0
    %437 = vmatmul.mubr.f32.gmra.mrb[0].mxu0 %v365
    %v438 = vpop.f32.mrb[0].mxu0
    %v439 = vadd.f32 %v370, %v438
    %v440 = vpop.f32.mrb[0].mxu0
    %441 = vdwg.mxu0
    %v442 = vmax.f32 %v439, 0.0
    %v444 = vsel %vm215, %v178, 0
    %446 = vmatprep.subr.mxu0 0.0
    %447 = vmatpush1.msra.mxu0 %v442
    %448 = vmatprep.subr.mxu0 0.0
    %449 = vmatpush1.msra.mxu0 0.0
    %450 = vmatprep.subr.mxu0 0.0
    %451 = vmatpush1.msra.mxu0 0.0
    %452 = vmatprep.subr.mxu0 0.0
    %453 = vmatpush1.msra.mxu0 0.0
    %454 = vmatprep.subr.mxu0 0.0
    %455 = vmatpush1.msra.mxu0 0.0
    %456 = vmatprep.subr.mxu0 0.0
    %457 = vmatpush1.msra.mxu0 0.0
    %458 = vmatprep.subr.mxu0 0.0
    %459 = vmatpush1.msra.mxu0 0.0
    %460 = vmatprep.subr.mxu0 0.0
    %461 = vmatpush1.msra.mxu0 0.0
    %462 = vmatprep.subr.mxu0 0.0
    %463 = vmatpush1.msra.mxu0 0.0
    %464 = vmatprep.subr.mxu0 0.0
    %465 = vmatpush1.msra.mxu0 0.0
    %466 = vmatprep.subr.mxu0 0.0
    %467 = vmatpush1.msra.mxu0 0.0
    %468 = vmatprep.subr.mxu0 0.0
    %469 = vmatpush1.msra.mxu0 0.0
    %470 = vmatprep.subr.mxu0 0.0
    %471 = vmatpush1.msra.mxu0 0.0
    %472 = vmatprep.subr.mxu0 0.0
    %473 = vmatpush1.msra.mxu0 0.0
    %474 = vmatprep.subr.mxu0 0.0
    %475 = vmatpush1.msra.mxu0 0.0
    %476 = vmatprep.subr.mxu0 0.0
    %477 = vmatpush1.msra.mxu0 0.0
    %478 = vmatprep.subr.mxu0 0.0
    %479 = vmatpush1.msra.mxu0 0.0
    %480 = vmatprep.subr.mxu0 0.0
    %481 = vmatpush1.msra.mxu0 0.0
    %482 = vmatprep.subr.mxu0 0.0
    %483 = vmatpush1.msra.mxu0 0.0
    %484 = vmatprep.subr.mxu0 0.0
    %485 = vmatpush1.msra.mxu0 0.0
    %486 = vmatprep.subr.mxu0 0.0
    %487 = vmatpush1.msra.mxu0 0.0
    %488 = vmatprep.subr.mxu0 0.0
    %489 = vmatpush1.msra.mxu0 0.0
    %490 = vmatprep.subr.mxu0 0.0
    %491 = vmatpush1.msra.mxu0 0.0
    %492 = vmatprep.subr.mxu0 0.0
    %493 = vmatpush1.msra.mxu0 0.0
    %494 = vmatprep.subr.mxu0 0.0
    %495 = vmatpush1.msra.mxu0 0.0
    %496 = vmatprep.subr.mxu0 0.0
    %497 = vmatpush1.msra.mxu0 0.0
    %498 = vmatprep.subr.mxu0 0.0
    %499 = vmatpush1.msra.mxu0 0.0
    %500 = vmatprep.subr.mxu0 0.0
    %501 = vmatpush1.msra.mxu0 0.0
    %502 = vmatprep.subr.mxu0 0.0
    %503 = vmatpush1.msra.mxu0 0.0
    %504 = vmatprep.subr.mxu0 0.0
    %505 = vmatpush1.msra.mxu0 0.0
    %506 = vmatprep.subr.mxu0 0.0
    %507 = vmatpush1.msra.mxu0 0.0
    %508 = vmatprep.subr.mxu0 0.0
    %509 = vmatpush1.msra.mxu0 0.0
    %510 = vmatprep.mubr.f32.mxu0 0.0
    %511 = vmatmul.mubr.f32.gmra.mrb[0].mxu0 %v444
    %v512 = vpop.f32.mrb[0].mxu0
    %v513 = vadd.f32 0.0, %v512
    %v514 = vpop.f32.mrb[0].mxu0
    %515 = vdwg.mxu0
    %v516 = vld [vmem:[#allocation7] sm:$0xff]
    %v517 = vld [vmem:[#allocation7 + $0x8] sm:$0xff]
    %v518 = vld [vmem:[#allocation7 + $0x10] sm:$0xff]
    %v519 = vld [vmem:[#allocation7 + $0x18] sm:$0xff]
    %v520 = vld [vmem:[#allocation7 + $0x20] sm:$0xff]
    %v521 = vld [vmem:[#allocation7 + $0x28] sm:$0xff]
    %v522 = vld [vmem:[#allocation7 + $0x30] sm:$0xff]
    %v523 = vld [vmem:[#allocation7 + $0x38] sm:$0xff]
    %v524 = vld [vmem:[#allocation7 + $0x40] sm:$0xff]
    %v525 = vld [vmem:[#allocation7 + $0x48] sm:$0xff]
    %v526 = vld [vmem:[#allocation7 + $0x50] sm:$0xff]
    %v527 = vld [vmem:[#allocation7 + $0x58] sm:$0xff]
    %v528 = vld [vmem:[#allocation7 + $0x60] sm:$0xff]
    %v529 = vld [vmem:[#allocation7 + $0x68] sm:$0xff]
    %v530 = vld [vmem:[#allocation7 + $0x70] sm:$0xff]
    %v531 = vld [vmem:[#allocation7 + $0x78] sm:$0xff]
    %v532 = vld [vmem:[#allocation9] sm:$0x1]
    %v533 = vld [vmem:[#allocation10] sm:$0xff]
    %v534 = vld [vmem:[#allocation10 + $0x8] sm:$0xff]
    %v535 = vld [vmem:[#allocation10 + $0x10] sm:$0xff]
    %v536 = vld [vmem:[#allocation10 + $0x18] sm:$0xff]
    %v537 = vld [vmem:[#allocation10 + $0x20] sm:$0xff]
    %v538 = vld [vmem:[#allocation10 + $0x28] sm:$0xff]
    %v539 = vld [vmem:[#allocation10 + $0x30] sm:$0xff]
    %v540 = vld [vmem:[#allocation10 + $0x38] sm:$0xff]
    %v541 = vld [vmem:[#allocation10 + $0x40] sm:$0xff]
    %v542 = vld [vmem:[#allocation10 + $0x48] sm:$0xff]
    %v543 = vld [vmem:[#allocation10 + $0x50] sm:$0xff]
    %v544 = vld [vmem:[#allocation10 + $0x58] sm:$0xff]
    %v545 = vld [vmem:[#allocation10 + $0x60] sm:$0xff]
    %v546 = vld [vmem:[#allocation10 + $0x68] sm:$0xff]
    %v547 = vld [vmem:[#allocation10 + $0x70] sm:$0xff]
    %v548 = vld [vmem:[#allocation10 + $0x78] sm:$0xff]
    %v549 = vld [vmem:[#allocation12] sm:$0x1]
    %550 = vmatprep.subr.mxu0 0.0
    %551 = vmatpush1.msra.mxu0 %v442
    %552 = vmatprep.subr.mxu0 0.0
    %553 = vmatpush1.msra.mxu0 0.0
    %554 = vmatprep.subr.mxu0 0.0
    %555 = vmatpush1.msra.mxu0 0.0
    %556 = vmatprep.subr.mxu0 0.0
    %557 = vmatpush1.msra.mxu0 0.0
    %558 = vmatprep.subr.mxu0 0.0
    %559 = vmatpush1.msra.mxu0 0.0
    %560 = vmatprep.subr.mxu0 0.0
    %561 = vmatpush1.msra.mxu0 0.0
    %562 = vmatprep.subr.mxu0 0.0
    %563 = vmatpush1.msra.mxu0 0.0
    %564 = vmatprep.subr.mxu0 0.0
    %565 = vmatpush1.msra.mxu0 0.0
    %566 = vmatprep.subr.mxu0 0.0
    %567 = vmatpush1.msra.mxu0 0.0
    %568 = vmatprep.subr.mxu0 0.0
    %569 = vmatpush1.msra.mxu0 0.0
    %570 = vmatprep.subr.mxu0 0.0
    %571 = vmatpush1.msra.mxu0 0.0
    %572 = vmatprep.subr.mxu0 0.0
    %573 = vmatpush1.msra.mxu0 0.0
    %574 = vmatprep.subr.mxu0 0.0
    %575 = vmatpush1.msra.mxu0 0.0
    %576 = vmatprep.subr.mxu0 0.0
    %577 = vmatpush1.msra.mxu0 0.0
    %578 = vmatprep.subr.mxu0 0.0
    %579 = vmatpush1.msra.mxu0 0.0
    %580 = vmatprep.subr.mxu0 0.0
    %581 = vmatpush1.msra.mxu0 0.0
    %582 = vmatprep.subr.mxu0 0.0
    %583 = vmatpush1.msra.mxu0 0.0
    %584 = vmatprep.subr.mxu0 0.0
    %585 = vmatpush1.msra.mxu0 0.0
    %586 = vmatprep.subr.mxu0 0.0
    %587 = vmatpush1.msra.mxu0 0.0
    %588 = vmatprep.subr.mxu0 0.0
    %589 = vmatpush1.msra.mxu0 0.0
    %590 = vmatprep.subr.mxu0 0.0
    %591 = vmatpush1.msra.mxu0 0.0
    %592 = vmatprep.subr.mxu0 0.0
    %593 = vmatpush1.msra.mxu0 0.0
    %594 = vmatprep.subr.mxu0 0.0
    %595 = vmatpush1.msra.mxu0 0.0
    %596 = vmatprep.subr.mxu0 0.0
    %597 = vmatpush1.msra.mxu0 0.0
    %598 = vmatprep.subr.mxu0 0.0
    %599 = vmatpush1.msra.mxu0 0.0
    %600 = vmatprep.subr.mxu0 0.0
    %601 = vmatpush1.msra.mxu0 0.0
    %602 = vmatprep.subr.mxu0 0.0
    %603 = vmatpush1.msra.mxu0 0.0
    %604 = vmatprep.subr.mxu0 0.0
    %605 = vmatpush1.msra.mxu0 0.0
    %606 = vmatprep.subr.mxu0 0.0
    %607 = vmatpush1.msra.mxu0 0.0
    %608 = vmatprep.subr.mxu0 0.0
    %609 = vmatpush1.msra.mxu0 0.0
    %610 = vmatprep.subr.mxu0 0.0
    %611 = vmatpush1.msra.mxu0 0.0
    %612 = vmatprep.subr.mxu0 0.0
    %613 = vmatpush1.msra.mxu0 0.0
    %614 = vmatprep.mubr.f32.mxu0 0.0
    %615 = vmatmul.mubr.f32.gmra.mrb[0].mxu0 %v217
    %v616 = vpop.f32.mrb[0].mxu0
    %v617 = vadd.f32 0.0, %v616
    %v618 = vpop.f32.mrb[0].mxu0
    %619 = vdwg.mxu0
    %v621 = vlaneseq
    %v622 = vshrl.u32 %v621, 7
    %v623 = vsub.s32 0, %v622
    %v624 = vrot.slane %v532, %v623
    %626 = vmatprep.subr.mxu0 0.0
    %627 = vmatpush1.msra.mxu0 %v516
    %628 = vmatprep.subr.mxu0 0.0
    %629 = vmatpush1.msra.mxu0 %v517
    %630 = vmatprep.subr.mxu0 0.0
    %631 = vmatpush1.msra.mxu0 %v518
    %632 = vmatprep.subr.mxu0 0.0
    %633 = vmatpush1.msra.mxu0 %v519
    %634 = vmatprep.subr.mxu0 0.0
    %635 = vmatpush1.msra.mxu0 %v520
    %636 = vmatprep.subr.mxu0 0.0
    %637 = vmatpush1.msra.mxu0 %v521
    %638 = vmatprep.subr.mxu0 0.0
    %639 = vmatpush1.msra.mxu0 %v522
    %640 = vmatprep.subr.mxu0 0.0
    %641 = vmatpush1.msra.mxu0 %v523
    %642 = vmatprep.subr.mxu0 0.0
    %643 = vmatpush1.msra.mxu0 %v524
    %644 = vmatprep.subr.mxu0 0.0
    %645 = vmatpush1.msra.mxu0 %v525
    %646 = vmatprep.subr.mxu0 0.0
    %647 = vmatpush1.msra.mxu0 %v526
    %648 = vmatprep.subr.mxu0 0.0
    %649 = vmatpush1.msra.mxu0 %v527
    %650 = vmatprep.subr.mxu0 0.0
    %651 = vmatpush1.msra.mxu0 %v528
    %652 = vmatprep.subr.mxu0 0.0
    %653 = vmatpush1.msra.mxu0 %v529
    %654 = vmatprep.subr.mxu0 0.0
    %655 = vmatpush1.msra.mxu0 %v530
    %656 = vmatprep.subr.mxu0 0.0
    %657 = vmatpush1.msra.mxu0 %v531
    %658 = vmatprep.subr.mxu0 0.0
    %659 = vmatpush1.msra.mxu0 0.0
    %660 = vmatprep.subr.mxu0 0.0
    %661 = vmatpush1.msra.mxu0 0.0
    %662 = vmatprep.subr.mxu0 0.0
    %663 = vmatpush1.msra.mxu0 0.0
    %664 = vmatprep.subr.mxu0 0.0
    %665 = vmatpush1.msra.mxu0 0.0
    %666 = vmatprep.subr.mxu0 0.0
    %667 = vmatpush1.msra.mxu0 0.0
    %668 = vmatprep.subr.mxu0 0.0
    %669 = vmatpush1.msra.mxu0 0.0
    %670 = vmatprep.subr.mxu0 0.0
    %671 = vmatpush1.msra.mxu0 0.0
    %672 = vmatprep.subr.mxu0 0.0
    %673 = vmatpush1.msra.mxu0 0.0
    %674 = vmatprep.subr.mxu0 0.0
    %675 = vmatpush1.msra.mxu0 0.0
    %676 = vmatprep.subr.mxu0 0.0
    %677 = vmatpush1.msra.mxu0 0.0
    %678 = vmatprep.subr.mxu0 0.0
    %679 = vmatpush1.msra.mxu0 0.0
    %680 = vmatprep.subr.mxu0 0.0
    %681 = vmatpush1.msra.mxu0 0.0
    %682 = vmatprep.subr.mxu0 0.0
    %683 = vmatpush1.msra.mxu0 0.0
    %684 = vmatprep.subr.mxu0 0.0
    %685 = vmatpush1.msra.mxu0 0.0
    %686 = vmatprep.subr.mxu0 0.0
    %687 = vmatpush1.msra.mxu0 0.0
    %688 = vmatprep.subr.mxu0 0.0
    %689 = vmatpush1.msra.mxu0 0.0
    %690 = vmatprep.mubr.f32.mxu0 0.0
    %691 = vmatmul.mubr.f32.gmra.mrb[0].mxu0 %v617
    %v692 = vpop.f32.mrb[0].mxu0
    %v693 = vadd.f32 %v624, %v692
    %v694 = vpop.f32.mrb[0].mxu0
    %695 = vdwg.mxu0
    %v696 = vmax.f32 %v693, 0.0
    %v698 = vlaneseq
    %v699 = vshrl.u32 %v698, 7
    %v700 = vsub.s32 0, %v699
    %v701 = vrot.slane %v549, %v700
    %703 = vmatprep.subr.mxu0 0.0
    %704 = vmatpush1.msra.mxu0 %v533
    %705 = vmatprep.subr.mxu0 0.0
    %706 = vmatpush1.msra.mxu0 %v534
    %707 = vmatprep.subr.mxu0 0.0
    %708 = vmatpush1.msra.mxu0 %v535
    %709 = vmatprep.subr.mxu0 0.0
    %710 = vmatpush1.msra.mxu0 %v536
    %711 = vmatprep.subr.mxu0 0.0
    %712 = vmatpush1.msra.mxu0 %v537
    %713 = vmatprep.subr.mxu0 0.0
    %714 = vmatpush1.msra.mxu0 %v538
    %715 = vmatprep.subr.mxu0 0.0
    %716 = vmatpush1.msra.mxu0 %v539
    %717 = vmatprep.subr.mxu0 0.0
    %718 = vmatpush1.msra.mxu0 %v540
    %719 = vmatprep.subr.mxu0 0.0
    %720 = vmatpush1.msra.mxu0 %v541
    %721 = vmatprep.subr.mxu0 0.0
    %722 = vmatpush1.msra.mxu0 %v542
    %723 = vmatprep.subr.mxu0 0.0
    %724 = vmatpush1.msra.mxu0 %v543
    %725 = vmatprep.subr.mxu0 0.0
    %726 = vmatpush1.msra.mxu0 %v544
    %727 = vmatprep.subr.mxu0 0.0
    %728 = vmatpush1.msra.mxu0 %v545
    %729 = vmatprep.subr.mxu0 0.0
    %730 = vmatpush1.msra.mxu0 %v546
    %731 = vmatprep.subr.mxu0 0.0
    %732 = vmatpush1.msra.mxu0 %v547
    %733 = vmatprep.subr.mxu0 0.0
    %734 = vmatpush1.msra.mxu0 %v548
    %735 = vmatprep.subr.mxu0 0.0
    %736 = vmatpush1.msra.mxu0 0.0
    %737 = vmatprep.subr.mxu0 0.0
    %738 = vmatpush1.msra.mxu0 0.0
    %739 = vmatprep.subr.mxu0 0.0
    %740 = vmatpush1.msra.mxu0 0.0
    %741 = vmatprep.subr.mxu0 0.0
    %742 = vmatpush1.msra.mxu0 0.0
    %743 = vmatprep.subr.mxu0 0.0
    %744 = vmatpush1.msra.mxu0 0.0
    %745 = vmatprep.subr.mxu0 0.0
    %746 = vmatpush1.msra.mxu0 0.0
    %747 = vmatprep.subr.mxu0 0.0
    %748 = vmatpush1.msra.mxu0 0.0
    %749 = vmatprep.subr.mxu0 0.0
    %750 = vmatpush1.msra.mxu0 0.0
    %751 = vmatprep.subr.mxu0 0.0
    %752 = vmatpush1.msra.mxu0 0.0
    %753 = vmatprep.subr.mxu0 0.0
    %754 = vmatpush1.msra.mxu0 0.0
    %755 = vmatprep.subr.mxu0 0.0
    %756 = vmatpush1.msra.mxu0 0.0
    %757 = vmatprep.subr.mxu0 0.0
    %758 = vmatpush1.msra.mxu0 0.0
    %759 = vmatprep.subr.mxu0 0.0
    %760 = vmatpush1.msra.mxu0 0.0
    %761 = vmatprep.subr.mxu0 0.0
    %762 = vmatpush1.msra.mxu0 0.0
    %763 = vmatprep.subr.mxu0 0.0
    %764 = vmatpush1.msra.mxu0 0.0
    %765 = vmatprep.subr.mxu0 0.0
    %766 = vmatpush1.msra.mxu0 0.0
    %767 = vmatprep.mubr.f32.mxu0 0.0
    %768 = vmatmul.mubr.f32.gmra.mrb[0].mxu0 %v696
    %v769 = vpop.f32.mrb[0].mxu0
    %v770 = vadd.f32 %v701, %v769
    %v771 = vpop.f32.mrb[0].mxu0
    %772 = vdwg.mxu0
    %v773 = vmax.f32 %v770, 0.0
    %774 = vmatprep.subr.mxu0 0.0
    %775 = vmatpush1.msra.mxu0 %v773
    %776 = vmatprep.subr.mxu0 0.0
    %777 = vmatpush1.msra.mxu0 0.0
    %778 = vmatprep.subr.mxu0 0.0
    %779 = vmatpush1.msra.mxu0 0.0
    %780 = vmatprep.subr.mxu0 0.0
    %781 = vmatpush1.msra.mxu0 0.0
    %782 = vmatprep.subr.mxu0 0.0
    %783 = vmatpush1.msra.mxu0 0.0
    %784 = vmatprep.subr.mxu0 0.0
    %785 = vmatpush1.msra.mxu0 0.0
    %786 = vmatprep.subr.mxu0 0.0
    %787 = vmatpush1.msra.mxu0 0.0
    %788 = vmatprep.subr.mxu0 0.0
    %789 = vmatpush1.msra.mxu0 0.0
    %790 = vmatprep.subr.mxu0 0.0
    %791 = vmatpush1.msra.mxu0 0.0
    %792 = vmatprep.subr.mxu0 0.0
    %793 = vmatpush1.msra.mxu0 0.0
    %794 = vmatprep.subr.mxu0 0.0
    %795 = vmatpush1.msra.mxu0 0.0
    %796 = vmatprep.subr.mxu0 0.0
    %797 = vmatpush1.msra.mxu0 0.0
    %798 = vmatprep.subr.mxu0 0.0
    %799 = vmatpush1.msra.mxu0 0.0
    %800 = vmatprep.subr.mxu0 0.0
    %801 = vmatpush1.msra.mxu0 0.0
    %802 = vmatprep.subr.mxu0 0.0
    %803 = vmatpush1.msra.mxu0 0.0
    %804 = vmatprep.subr.mxu0 0.0
    %805 = vmatpush1.msra.mxu0 0.0
    %806 = vmatprep.subr.mxu0 0.0
    %807 = vmatpush1.msra.mxu0 0.0
    %808 = vmatprep.subr.mxu0 0.0
    %809 = vmatpush1.msra.mxu0 0.0
    %810 = vmatprep.subr.mxu0 0.0
    %811 = vmatpush1.msra.mxu0 0.0
    %812 = vmatprep.subr.mxu0 0.0
    %813 = vmatpush1.msra.mxu0 0.0
    %814 = vmatprep.subr.mxu0 0.0
    %815 = vmatpush1.msra.mxu0 0.0
    %816 = vmatprep.subr.mxu0 0.0
    %817 = vmatpush1.msra.mxu0 0.0
    %818 = vmatprep.subr.mxu0 0.0
    %819 = vmatpush1.msra.mxu0 0.0
    %820 = vmatprep.subr.mxu0 0.0
    %821 = vmatpush1.msra.mxu0 0.0
    %822 = vmatprep.subr.mxu0 0.0
    %823 = vmatpush1.msra.mxu0 0.0
    %824 = vmatprep.subr.mxu0 0.0
    %825 = vmatpush1.msra.mxu0 0.0
    %826 = vmatprep.subr.mxu0 0.0
    %827 = vmatpush1.msra.mxu0 0.0
    %828 = vmatprep.subr.mxu0 0.0
    %829 = vmatpush1.msra.mxu0 0.0
    %830 = vmatprep.subr.mxu0 0.0
    %831 = vmatpush1.msra.mxu0 0.0
    %832 = vmatprep.subr.mxu0 0.0
    %833 = vmatpush1.msra.mxu0 0.0
    %834 = vmatprep.subr.mxu0 0.0
    %835 = vmatpush1.msra.mxu0 0.0
    %836 = vmatprep.subr.mxu0 0.0
    %837 = vmatpush1.msra.mxu0 0.0
    %838 = vmatprep.mubr.f32.mxu0 0.0
    %839 = vmatmul.mubr.f32.gmra.mrb[0].mxu0 %v444
    %v840 = vpop.f32.mrb[0].mxu0
    %v841 = vadd.f32 0.0, %v840
    %v842 = vpop.f32.mrb[0].mxu0
    %843 = vdwg.mxu0
    %s844 = scalar_lea.vmem %s0, 8
    %v845 = vld [vmem:[%s844] sm:$0xff]
    %s846 = scalar_lea.vmem %s1, 8
    %v847 = vld [vmem:[%s846] sm:$0xff]
    %v849 = vsel %vm215, %v845, 0
    %851 = vmatprep.subr.mxu0 0.0
    %852 = vmatpush1.msra.mxu0 %v847
    %853 = vmatprep.subr.mxu0 0.0
    %854 = vmatpush1.msra.mxu0 0.0
    %855 = vmatprep.subr.mxu0 0.0
    %856 = vmatpush1.msra.mxu0 0.0
    %857 = vmatprep.subr.mxu0 0.0
    %858 = vmatpush1.msra.mxu0 0.0
    %859 = vmatprep.subr.mxu0 0.0
    %860 = vmatpush1.msra.mxu0 0.0
    %861 = vmatprep.subr.mxu0 0.0
    %862 = vmatpush1.msra.mxu0 0.0
    %863 = vmatprep.subr.mxu0 0.0
    %864 = vmatpush1.msra.mxu0 0.0
    %865 = vmatprep.subr.mxu0 0.0
    %866 = vmatpush1.msra.mxu0 0.0
    %867 = vmatprep.subr.mxu0 0.0
    %868 = vmatpush1.msra.mxu0 0.0
    %869 = vmatprep.subr.mxu0 0.0
    %870 = vmatpush1.msra.mxu0 0.0
    %871 = vmatprep.subr.mxu0 0.0
    %872 = vmatpush1.msra.mxu0 0.0
    %873 = vmatprep.subr.mxu0 0.0
    %874 = vmatpush1.msra.mxu0 0.0
    %875 = vmatprep.subr.mxu0 0.0
    %876 = vmatpush1.msra.mxu0 0.0
    %877 = vmatprep.subr.mxu0 0.0
    %878 = vmatpush1.msra.mxu0 0.0
    %879 = vmatprep.subr.mxu0 0.0
    %880 = vmatpush1.msra.mxu0 0.0
    %881 = vmatprep.subr.mxu0 0.0
    %882 = vmatpush1.msra.mxu0 0.0
    %883 = vmatprep.subr.mxu0 0.0
    %884 = vmatpush1.msra.mxu0 0.0
    %885 = vmatprep.subr.mxu0 0.0
    %886 = vmatpush1.msra.mxu0 0.0
    %887 = vmatprep.subr.mxu0 0.0
    %888 = vmatpush1.msra.mxu0 0.0
    %889 = vmatprep.subr.mxu0 0.0
    %890 = vmatpush1.msra.mxu0 0.0
    %891 = vmatprep.subr.mxu0 0.0
    %892 = vmatpush1.msra.mxu0 0.0
    %893 = vmatprep.subr.mxu0 0.0
    %894 = vmatpush1.msra.mxu0 0.0
    %895 = vmatprep.subr.mxu0 0.0
    %896 = vmatpush1.msra.mxu0 0.0
    %897 = vmatprep.subr.mxu0 0.0
    %898 = vmatpush1.msra.mxu0 0.0
    %899 = vmatprep.subr.mxu0 0.0
    %900 = vmatpush1.msra.mxu0 0.0
    %901 = vmatprep.subr.mxu0 0.0
    %902 = vmatpush1.msra.mxu0 0.0
    %903 = vmatprep.subr.mxu0 0.0
    %904 = vmatpush1.msra.mxu0 0.0
    %905 = vmatprep.subr.mxu0 0.0
    %906 = vmatpush1.msra.mxu0 0.0
    %907 = vmatprep.subr.mxu0 0.0
    %908 = vmatpush1.msra.mxu0 0.0
    %909 = vmatprep.subr.mxu0 0.0
    %910 = vmatpush1.msra.mxu0 0.0
    %911 = vmatprep.subr.mxu0 0.0
    %912 = vmatpush1.msra.mxu0 0.0
    %913 = vmatprep.subr.mxu0 0.0
    %914 = vmatpush1.msra.mxu0 0.0
    %915 = vmatprep.mubr.f32.mxu0 0.0
    %916 = vmatmul.mubr.f32.gmra.mrb[0].mxu0 %v849
    %v917 = vpop.f32.mrb[0].mxu0
    %v918 = vadd.f32 0.0, %v917
    %v919 = vpop.f32.mrb[0].mxu0
    %920 = vdwg.mxu0
    %921 = vmatprep.subr.mxu0 0.0
    %922 = vmatpush1.msra.mxu0 %v181
    %923 = vmatprep.subr.mxu0 0.0
    %924 = vmatpush1.msra.mxu0 %v182
    %925 = vmatprep.subr.mxu0 0.0
    %926 = vmatpush1.msra.mxu0 %v183
    %927 = vmatprep.subr.mxu0 0.0
    %928 = vmatpush1.msra.mxu0 %v184
    %929 = vmatprep.subr.mxu0 0.0
    %930 = vmatpush1.msra.mxu0 %v185
    %931 = vmatprep.subr.mxu0 0.0
    %932 = vmatpush1.msra.mxu0 %v186
    %933 = vmatprep.subr.mxu0 0.0
    %934 = vmatpush1.msra.mxu0 %v187
    %935 = vmatprep.subr.mxu0 0.0
    %936 = vmatpush1.msra.mxu0 %v188
    %937 = vmatprep.subr.mxu0 0.0
    %938 = vmatpush1.msra.mxu0 %v189
    %939 = vmatprep.subr.mxu0 0.0
    %940 = vmatpush1.msra.mxu0 %v190
    %941 = vmatprep.subr.mxu0 0.0
    %942 = vmatpush1.msra.mxu0 %v191
    %943 = vmatprep.subr.mxu0 0.0
    %944 = vmatpush1.msra.mxu0 %v192
    %945 = vmatprep.subr.mxu0 0.0
    %946 = vmatpush1.msra.mxu0 %v193
    %947 = vmatprep.subr.mxu0 0.0
    %948 = vmatpush1.msra.mxu0 %v194
    %949 = vmatprep.subr.mxu0 0.0
    %950 = vmatpush1.msra.mxu0 %v195
    %951 = vmatprep.subr.mxu0 0.0
    %952 = vmatpush1.msra.mxu0 %v196
    %953 = vmatprep.subr.mxu0 0.0
    %954 = vmatpush1.msra.mxu0 0.0
    %955 = vmatprep.subr.mxu0 0.0
    %956 = vmatpush1.msra.mxu0 0.0
    %957 = vmatprep.subr.mxu0 0.0
    %958 = vmatpush1.msra.mxu0 0.0
    %959 = vmatprep.subr.mxu0 0.0
    %960 = vmatpush1.msra.mxu0 0.0
    %961 = vmatprep.subr.mxu0 0.0
    %962 = vmatpush1.msra.mxu0 0.0
    %963 = vmatprep.subr.mxu0 0.0
    %964 = vmatpush1.msra.mxu0 0.0
    %965 = vmatprep.subr.mxu0 0.0
    %966 = vmatpush1.msra.mxu0 0.0
    %967 = vmatprep.subr.mxu0 0.0
    %968 = vmatpush1.msra.mxu0 0.0
    %969 = vmatprep.subr.mxu0 0.0
    %970 = vmatpush1.msra.mxu0 0.0
    %971 = vmatprep.subr.mxu0 0.0
    %972 = vmatpush1.msra.mxu0 0.0
    %973 = vmatprep.subr.mxu0 0.0
    %974 = vmatpush1.msra.mxu0 0.0
    %975 = vmatprep.subr.mxu0 0.0
    %976 = vmatpush1.msra.mxu0 0.0
    %977 = vmatprep.subr.mxu0 0.0
    %978 = vmatpush1.msra.mxu0 0.0
    %979 = vmatprep.subr.mxu0 0.0
    %980 = vmatpush1.msra.mxu0 0.0
    %981 = vmatprep.subr.mxu0 0.0
    %982 = vmatpush1.msra.mxu0 0.0
    %983 = vmatprep.subr.mxu0 0.0
    %984 = vmatpush1.msra.mxu0 0.0
    %985 = vmatprep.mubr.f32.mxu0 0.0
    %986 = vmatmul.mubr.f32.gmra.mrb[0].mxu0 %v918
    %v987 = vpop.f32.mrb[0].mxu0
    %v988 = vadd.f32 %v293, %v987
    %v989 = vpop.f32.mrb[0].mxu0
    %990 = vdwg.mxu0
    %v991 = vmax.f32 %v988, 0.0
    %992 = vmatprep.subr.mxu0 0.0
    %993 = vmatpush1.msra.mxu0 %v198
    %994 = vmatprep.subr.mxu0 0.0
    %995 = vmatpush1.msra.mxu0 %v199
    %996 = vmatprep.subr.mxu0 0.0
    %997 = vmatpush1.msra.mxu0 %v200
    %998 = vmatprep.subr.mxu0 0.0
    %999 = vmatpush1.msra.mxu0 %v201
    %1000 = vmatprep.subr.mxu0 0.0
    %1001 = vmatpush1.msra.mxu0 %v202
    %1002 = vmatprep.subr.mxu0 0.0
    %1003 = vmatpush1.msra.mxu0 %v203
    %1004 = vmatprep.subr.mxu0 0.0
    %1005 = vmatpush1.msra.mxu0 %v204
    %1006 = vmatprep.subr.mxu0 0.0
    %1007 = vmatpush1.msra.mxu0 %v205
    %1008 = vmatprep.subr.mxu0 0.0
    %1009 = vmatpush1.msra.mxu0 %v206
    %1010 = vmatprep.subr.mxu0 0.0
    %1011 = vmatpush1.msra.mxu0 %v207
    %1012 = vmatprep.subr.mxu0 0.0
    %1013 = vmatpush1.msra.mxu0 %v208
    %1014 = vmatprep.subr.mxu0 0.0
    %1015 = vmatpush1.msra.mxu0 %v209
    %1016 = vmatprep.subr.mxu0 0.0
    %1017 = vmatpush1.msra.mxu0 %v210
    %1018 = vmatprep.subr.mxu0 0.0
    %1019 = vmatpush1.msra.mxu0 %v211
    %1020 = vmatprep.subr.mxu0 0.0
    %1021 = vmatpush1.msra.mxu0 %v212
    %1022 = vmatprep.subr.mxu0 0.0
    %1023 = vmatpush1.msra.mxu0 %v213
    %1024 = vmatprep.subr.mxu0 0.0
    %1025 = vmatpush1.msra.mxu0 0.0
    %1026 = vmatprep.subr.mxu0 0.0
    %1027 = vmatpush1.msra.mxu0 0.0
    %1028 = vmatprep.subr.mxu0 0.0
    %1029 = vmatpush1.msra.mxu0 0.0
    %1030 = vmatprep.subr.mxu0 0.0
    %1031 = vmatpush1.msra.mxu0 0.0
    %1032 = vmatprep.subr.mxu0 0.0
    %1033 = vmatpush1.msra.mxu0 0.0
    %1034 = vmatprep.subr.mxu0 0.0
    %1035 = vmatpush1.msra.mxu0 0.0
    %1036 = vmatprep.subr.mxu0 0.0
    %1037 = vmatpush1.msra.mxu0 0.0
    %1038 = vmatprep.subr.mxu0 0.0
    %1039 = vmatpush1.msra.mxu0 0.0
    %1040 = vmatprep.subr.mxu0 0.0
    %1041 = vmatpush1.msra.mxu0 0.0
    %1042 = vmatprep.subr.mxu0 0.0
    %1043 = vmatpush1.msra.mxu0 0.0
    %1044 = vmatprep.subr.mxu0 0.0
    %1045 = vmatpush1.msra.mxu0 0.0
    %1046 = vmatprep.subr.mxu0 0.0
    %1047 = vmatpush1.msra.mxu0 0.0
    %1048 = vmatprep.subr.mxu0 0.0
    %1049 = vmatpush1.msra.mxu0 0.0
    %1050 = vmatprep.subr.mxu0 0.0
    %1051 = vmatpush1.msra.mxu0 0.0
    %1052 = vmatprep.subr.mxu0 0.0
    %1053 = vmatpush1.msra.mxu0 0.0
    %1054 = vmatprep.subr.mxu0 0.0
    %1055 = vmatpush1.msra.mxu0 0.0
    %1056 = vmatprep.mubr.f32.mxu0 0.0
    %1057 = vmatmul.mubr.f32.gmra.mrb[0].mxu0 %v991
    %v1058 = vpop.f32.mrb[0].mxu0
    %v1059 = vadd.f32 %v370, %v1058
    %v1060 = vpop.f32.mrb[0].mxu0
    %1061 = vdwg.mxu0
    %v1062 = vmax.f32 %v1059, 0.0
    %1063 = vmatprep.subr.mxu0 0.0
    %1064 = vmatpush1.msra.mxu0 %v1062
    %1065 = vmatprep.subr.mxu0 0.0
    %1066 = vmatpush1.msra.mxu0 0.0
    %1067 = vmatprep.subr.mxu0 0.0
    %1068 = vmatpush1.msra.mxu0 0.0
    %1069 = vmatprep.subr.mxu0 0.0
    %1070 = vmatpush1.msra.mxu0 0.0
    %1071 = vmatprep.subr.mxu0 0.0
    %1072 = vmatpush1.msra.mxu0 0.0
    %1073 = vmatprep.subr.mxu0 0.0
    %1074 = vmatpush1.msra.mxu0 0.0
    %1075 = vmatprep.subr.mxu0 0.0
    %1076 = vmatpush1.msra.mxu0 0.0
    %1077 = vmatprep.subr.mxu0 0.0
    %1078 = vmatpush1.msra.mxu0 0.0
    %1079 = vmatprep.subr.mxu0 0.0
    %1080 = vmatpush1.msra.mxu0 0.0
    %1081 = vmatprep.subr.mxu0 0.0
    %1082 = vmatpush1.msra.mxu0 0.0
    %1083 = vmatprep.subr.mxu0 0.0
    %1084 = vmatpush1.msra.mxu0 0.0
    %1085 = vmatprep.subr.mxu0 0.0
    %1086 = vmatpush1.msra.mxu0 0.0
    %1087 = vmatprep.subr.mxu0 0.0
    %1088 = vmatpush1.msra.mxu0 0.0
    %1089 = vmatprep.subr.mxu0 0.0
    %1090 = vmatpush1.msra.mxu0 0.0
    %1091 = vmatprep.subr.mxu0 0.0
    %1092 = vmatpush1.msra.mxu0 0.0
    %1093 = vmatprep.subr.mxu0 0.0
    %1094 = vmatpush1.msra.mxu0 0.0
    %1095 = vmatprep.subr.mxu0 0.0
    %1096 = vmatpush1.msra.mxu0 0.0
    %1097 = vmatprep.subr.mxu0 0.0
    %1098 = vmatpush1.msra.mxu0 0.0
    %1099 = vmatprep.subr.mxu0 0.0
    %1100 = vmatpush1.msra.mxu0 0.0
    %1101 = vmatprep.subr.mxu0 0.0
    %1102 = vmatpush1.msra.mxu0 0.0
    %1103 = vmatprep.subr.mxu0 0.0
    %1104 = vmatpush1.msra.mxu0 0.0
    %1105 = vmatprep.subr.mxu0 0.0
    %1106 = vmatpush1.msra.mxu0 0.0
    %1107 = vmatprep.subr.mxu0 0.0
    %1108 = vmatpush1.msra.mxu0 0.0
    %1109 = vmatprep.subr.mxu0 0.0
    %1110 = vmatpush1.msra.mxu0 0.0
    %1111 = vmatprep.subr.mxu0 0.0
    %1112 = vmatpush1.msra.mxu0 0.0
    %1113 = vmatprep.subr.mxu0 0.0
    %1114 = vmatpush1.msra.mxu0 0.0
    %1115 = vmatprep.subr.mxu0 0.0
    %1116 = vmatpush1.msra.mxu0 0.0
    %1117 = vmatprep.subr.mxu0 0.0
    %1118 = vmatpush1.msra.mxu0 0.0
    %1119 = vmatprep.subr.mxu0 0.0
    %1120 = vmatpush1.msra.mxu0 0.0
    %1121 = vmatprep.subr.mxu0 0.0
    %1122 = vmatpush1.msra.mxu0 0.0
    %1123 = vmatprep.subr.mxu0 0.0
    %1124 = vmatpush1.msra.mxu0 0.0
    %1125 = vmatprep.subr.mxu0 0.0
    %1126 = vmatpush1.msra.mxu0 0.0
    %1127 = vmatprep.mubr.f32.mxu0 0.0
    %1128 = vmatmul.mubr.f32.gmra.mrb[0].mxu0 %v444
    %v1129 = vpop.f32.mrb[0].mxu0
    %v1130 = vadd.f32 0.0, %v1129
    %v1131 = vpop.f32.mrb[0].mxu0
    %1132 = vdwg.mxu0
    %1133 = vmatprep.subr.mxu0 0.0
    %1134 = vmatpush1.msra.mxu0 %v1062
    %1135 = vmatprep.subr.mxu0 0.0
    %1136 = vmatpush1.msra.mxu0 0.0
    %1137 = vmatprep.subr.mxu0 0.0
    %1138 = vmatpush1.msra.mxu0 0.0
    %1139 = vmatprep.subr.mxu0 0.0
    %1140 = vmatpush1.msra.mxu0 0.0
    %1141 = vmatprep.subr.mxu0 0.0
    %1142 = vmatpush1.msra.mxu0 0.0
    %1143 = vmatprep.subr.mxu0 0.0
    %1144 = vmatpush1.msra.mxu0 0.0
    %1145 = vmatprep.subr.mxu0 0.0
    %1146 = vmatpush1.msra.mxu0 0.0
    %1147 = vmatprep.subr.mxu0 0.0
    %1148 = vmatpush1.msra.mxu0 0.0
    %1149 = vmatprep.subr.mxu0 0.0
    %1150 = vmatpush1.msra.mxu0 0.0
    %1151 = vmatprep.subr.mxu0 0.0
    %1152 = vmatpush1.msra.mxu0 0.0
    %1153 = vmatprep.subr.mxu0 0.0
    %1154 = vmatpush1.msra.mxu0 0.0
    %1155 = vmatprep.subr.mxu0 0.0
    %1156 = vmatpush1.msra.mxu0 0.0
    %1157 = vmatprep.subr.mxu0 0.0
    %1158 = vmatpush1.msra.mxu0 0.0
    %1159 = vmatprep.subr.mxu0 0.0
    %1160 = vmatpush1.msra.mxu0 0.0
    %1161 = vmatprep.subr.mxu0 0.0
    %1162 = vmatpush1.msra.mxu0 0.0
    %1163 = vmatprep.subr.mxu0 0.0
    %1164 = vmatpush1.msra.mxu0 0.0
    %1165 = vmatprep.subr.mxu0 0.0
    %1166 = vmatpush1.msra.mxu0 0.0
    %1167 = vmatprep.subr.mxu0 0.0
    %1168 = vmatpush1.msra.mxu0 0.0
    %1169 = vmatprep.subr.mxu0 0.0
    %1170 = vmatpush1.msra.mxu0 0.0
    %1171 = vmatprep.subr.mxu0 0.0
    %1172 = vmatpush1.msra.mxu0 0.0
    %1173 = vmatprep.subr.mxu0 0.0
    %1174 = vmatpush1.msra.mxu0 0.0
    %1175 = vmatprep.subr.mxu0 0.0
    %1176 = vmatpush1.msra.mxu0 0.0
    %1177 = vmatprep.subr.mxu0 0.0
    %1178 = vmatpush1.msra.mxu0 0.0
    %1179 = vmatprep.subr.mxu0 0.0
    %1180 = vmatpush1.msra.mxu0 0.0
    %1181 = vmatprep.subr.mxu0 0.0
    %1182 = vmatpush1.msra.mxu0 0.0
    %1183 = vmatprep.subr.mxu0 0.0
    %1184 = vmatpush1.msra.mxu0 0.0
    %1185 = vmatprep.subr.mxu0 0.0
    %1186 = vmatpush1.msra.mxu0 0.0
    %1187 = vmatprep.subr.mxu0 0.0
    %1188 = vmatpush1.msra.mxu0 0.0
    %1189 = vmatprep.subr.mxu0 0.0
    %1190 = vmatpush1.msra.mxu0 0.0
    %1191 = vmatprep.subr.mxu0 0.0
    %1192 = vmatpush1.msra.mxu0 0.0
    %1193 = vmatprep.subr.mxu0 0.0
    %1194 = vmatpush1.msra.mxu0 0.0
    %1195 = vmatprep.subr.mxu0 0.0
    %1196 = vmatpush1.msra.mxu0 0.0
    %1197 = vmatprep.mubr.f32.mxu0 0.0
    %1198 = vmatmul.mubr.f32.gmra.mrb[0].mxu0 %v849
    %v1199 = vpop.f32.mrb[0].mxu0
    %v1200 = vadd.f32 0.0, %v1199
    %v1201 = vpop.f32.mrb[0].mxu0
    %1202 = vdwg.mxu0
    %1203 = vmatprep.subr.mxu0 0.0
    %1204 = vmatpush1.msra.mxu0 %v516
    %1205 = vmatprep.subr.mxu0 0.0
    %1206 = vmatpush1.msra.mxu0 %v517
    %1207 = vmatprep.subr.mxu0 0.0
    %1208 = vmatpush1.msra.mxu0 %v518
    %1209 = vmatprep.subr.mxu0 0.0
    %1210 = vmatpush1.msra.mxu0 %v519
    %1211 = vmatprep.subr.mxu0 0.0
    %1212 = vmatpush1.msra.mxu0 %v520
    %1213 = vmatprep.subr.mxu0 0.0
    %1214 = vmatpush1.msra.mxu0 %v521
    %1215 = vmatprep.subr.mxu0 0.0
    %1216 = vmatpush1.msra.mxu0 %v522
    %1217 = vmatprep.subr.mxu0 0.0
    %1218 = vmatpush1.msra.mxu0 %v523
    %1219 = vmatprep.subr.mxu0 0.0
    %1220 = vmatpush1.msra.mxu0 %v524
    %1221 = vmatprep.subr.mxu0 0.0
    %1222 = vmatpush1.msra.mxu0 %v525
    %1223 = vmatprep.subr.mxu0 0.0
    %1224 = vmatpush1.msra.mxu0 %v526
    %1225 = vmatprep.subr.mxu0 0.0
    %1226 = vmatpush1.msra.mxu0 %v527
    %1227 = vmatprep.subr.mxu0 0.0
    %1228 = vmatpush1.msra.mxu0 %v528
    %1229 = vmatprep.subr.mxu0 0.0
    %1230 = vmatpush1.msra.mxu0 %v529
    %1231 = vmatprep.subr.mxu0 0.0
    %1232 = vmatpush1.msra.mxu0 %v530
    %1233 = vmatprep.subr.mxu0 0.0
    %1234 = vmatpush1.msra.mxu0 %v531
    %1235 = vmatprep.subr.mxu0 0.0
    %1236 = vmatpush1.msra.mxu0 0.0
    %1237 = vmatprep.subr.mxu0 0.0
    %1238 = vmatpush1.msra.mxu0 0.0
    %1239 = vmatprep.subr.mxu0 0.0
    %1240 = vmatpush1.msra.mxu0 0.0
    %1241 = vmatprep.subr.mxu0 0.0
    %1242 = vmatpush1.msra.mxu0 0.0
    %1243 = vmatprep.subr.mxu0 0.0
    %1244 = vmatpush1.msra.mxu0 0.0
    %1245 = vmatprep.subr.mxu0 0.0
    %1246 = vmatpush1.msra.mxu0 0.0
    %1247 = vmatprep.subr.mxu0 0.0
    %1248 = vmatpush1.msra.mxu0 0.0
    %1249 = vmatprep.subr.mxu0 0.0
    %1250 = vmatpush1.msra.mxu0 0.0
    %1251 = vmatprep.subr.mxu0 0.0
    %1252 = vmatpush1.msra.mxu0 0.0
    %1253 = vmatprep.subr.mxu0 0.0
    %1254 = vmatpush1.msra.mxu0 0.0
    %1255 = vmatprep.subr.mxu0 0.0
    %1256 = vmatpush1.msra.mxu0 0.0
    %1257 = vmatprep.subr.mxu0 0.0
    %1258 = vmatpush1.msra.mxu0 0.0
    %1259 = vmatprep.subr.mxu0 0.0
    %1260 = vmatpush1.msra.mxu0 0.0
    %1261 = vmatprep.subr.mxu0 0.0
    %1262 = vmatpush1.msra.mxu0 0.0
    %1263 = vmatprep.subr.mxu0 0.0
    %1264 = vmatpush1.msra.mxu0 0.0
    %1265 = vmatprep.subr.mxu0 0.0
    %1266 = vmatpush1.msra.mxu0 0.0
    %1267 = vmatprep.mubr.f32.mxu0 0.0
    %1268 = vmatmul.mubr.f32.gmra.mrb[0].mxu0 %v1200
    %v1269 = vpop.f32.mrb[0].mxu0
    %v1270 = vadd.f32 %v624, %v1269
    %v1271 = vpop.f32.mrb[0].mxu0
    %1272 = vdwg.mxu0
    %v1273 = vmax.f32 %v1270, 0.0
    %1274 = vmatprep.subr.mxu0 0.0
    %1275 = vmatpush1.msra.mxu0 %v533
    %1276 = vmatprep.subr.mxu0 0.0
    %1277 = vmatpush1.msra.mxu0 %v534
    %1278 = vmatprep.subr.mxu0 0.0
    %1279 = vmatpush1.msra.mxu0 %v535
    %1280 = vmatprep.subr.mxu0 0.0
    %1281 = vmatpush1.msra.mxu0 %v536
    %1282 = vmatprep.subr.mxu0 0.0
    %1283 = vmatpush1.msra.mxu0 %v537
    %1284 = vmatprep.subr.mxu0 0.0
    %1285 = vmatpush1.msra.mxu0 %v538
    %1286 = vmatprep.subr.mxu0 0.0
    %1287 = vmatpush1.msra.mxu0 %v539
    %1288 = vmatprep.subr.mxu0 0.0
    %1289 = vmatpush1.msra.mxu0 %v540
    %1290 = vmatprep.subr.mxu0 0.0
    %1291 = vmatpush1.msra.mxu0 %v541
    %1292 = vmatprep.subr.mxu0 0.0
    %1293 = vmatpush1.msra.mxu0 %v542
    %1294 = vmatprep.subr.mxu0 0.0
    %1295 = vmatpush1.msra.mxu0 %v543
    %1296 = vmatprep.subr.mxu0 0.0
    %1297 = vmatpush1.msra.mxu0 %v544
    %1298 = vmatprep.subr.mxu0 0.0
    %1299 = vmatpush1.msra.mxu0 %v545
    %1300 = vmatprep.subr.mxu0 0.0
    %1301 = vmatpush1.msra.mxu0 %v546
    %1302 = vmatprep.subr.mxu0 0.0
    %1303 = vmatpush1.msra.mxu0 %v547
    %1304 = vmatprep.subr.mxu0 0.0
    %1305 = vmatpush1.msra.mxu0 %v548
    %1306 = vmatprep.subr.mxu0 0.0
    %1307 = vmatpush1.msra.mxu0 0.0
    %1308 = vmatprep.subr.mxu0 0.0
    %1309 = vmatpush1.msra.mxu0 0.0
    %1310 = vmatprep.subr.mxu0 0.0
    %1311 = vmatpush1.msra.mxu0 0.0
    %1312 = vmatprep.subr.mxu0 0.0
    %1313 = vmatpush1.msra.mxu0 0.0
    %1314 = vmatprep.subr.mxu0 0.0
    %1315 = vmatpush1.msra.mxu0 0.0
    %1316 = vmatprep.subr.mxu0 0.0
    %1317 = vmatpush1.msra.mxu0 0.0
    %1318 = vmatprep.subr.mxu0 0.0
    %1319 = vmatpush1.msra.mxu0 0.0
    %1320 = vmatprep.subr.mxu0 0.0
    %1321 = vmatpush1.msra.mxu0 0.0
    %1322 = vmatprep.subr.mxu0 0.0
    %1323 = vmatpush1.msra.mxu0 0.0
    %1324 = vmatprep.subr.mxu0 0.0
    %1325 = vmatpush1.msra.mxu0 0.0
    %1326 = vmatprep.subr.mxu0 0.0
    %1327 = vmatpush1.msra.mxu0 0.0
    %1328 = vmatprep.subr.mxu0 0.0
    %1329 = vmatpush1.msra.mxu0 0.0
    %1330 = vmatprep.subr.mxu0 0.0
    %1331 = vmatpush1.msra.mxu0 0.0
    %1332 = vmatprep.subr.mxu0 0.0
    %1333 = vmatpush1.msra.mxu0 0.0
    %1334 = vmatprep.subr.mxu0 0.0
    %1335 = vmatpush1.msra.mxu0 0.0
    %1336 = vmatprep.subr.mxu0 0.0
    %1337 = vmatpush1.msra.mxu0 0.0
    %1338 = vmatprep.mubr.f32.mxu0 0.0
    %1339 = vmatmul.mubr.f32.gmra.mrb[0].mxu0 %v1273
    %v1340 = vpop.f32.mrb[0].mxu0
    %v1341 = vadd.f32 %v701, %v1340
    %v1342 = vpop.f32.mrb[0].mxu0
    %1343 = vdwg.mxu0
    %v1344 = vmax.f32 %v1341, 0.0
    %1345 = vmatprep.subr.mxu0 0.0
    %1346 = vmatpush1.msra.mxu0 %v1344
    %1347 = vmatprep.subr.mxu0 0.0
    %1348 = vmatpush1.msra.mxu0 0.0
    %1349 = vmatprep.subr.mxu0 0.0
    %1350 = vmatpush1.msra.mxu0 0.0
    %1351 = vmatprep.subr.mxu0 0.0
    %1352 = vmatpush1.msra.mxu0 0.0
    %1353 = vmatprep.subr.mxu0 0.0
    %1354 = vmatpush1.msra.mxu0 0.0
    %1355 = vmatprep.subr.mxu0 0.0
    %1356 = vmatpush1.msra.mxu0 0.0
    %1357 = vmatprep.subr.mxu0 0.0
    %1358 = vmatpush1.msra.mxu0 0.0
    %1359 = vmatprep.subr.mxu0 0.0
    %1360 = vmatpush1.msra.mxu0 0.0
    %1361 = vmatprep.subr.mxu0 0.0
    %1362 = vmatpush1.msra.mxu0 0.0
    %1363 = vmatprep.subr.mxu0 0.0
    %1364 = vmatpush1.msra.mxu0 0.0
    %1365 = vmatprep.subr.mxu0 0.0
    %1366 = vmatpush1.msra.mxu0 0.0
    %1367 = vmatprep.subr.mxu0 0.0
    %1368 = vmatpush1.msra.mxu0 0.0
    %1369 = vmatprep.subr.mxu0 0.0
    %1370 = vmatpush1.msra.mxu0 0.0
    %1371 = vmatprep.subr.mxu0 0.0
    %1372 = vmatpush1.msra.mxu0 0.0
    %1373 = vmatprep.subr.mxu0 0.0
    %1374 = vmatpush1.msra.mxu0 0.0
    %1375 = vmatprep.subr.mxu0 0.0
    %1376 = vmatpush1.msra.mxu0 0.0
    %1377 = vmatprep.subr.mxu0 0.0
    %1378 = vmatpush1.msra.mxu0 0.0
    %1379 = vmatprep.subr.mxu0 0.0
    %1380 = vmatpush1.msra.mxu0 0.0
    %1381 = vmatprep.subr.mxu0 0.0
    %1382 = vmatpush1.msra.mxu0 0.0
    %1383 = vmatprep.subr.mxu0 0.0
    %1384 = vmatpush1.msra.mxu0 0.0
    %1385 = vmatprep.subr.mxu0 0.0
    %1386 = vmatpush1.msra.mxu0 0.0
    %1387 = vmatprep.subr.mxu0 0.0
    %1388 = vmatpush1.msra.mxu0 0.0
    %1389 = vmatprep.subr.mxu0 0.0
    %1390 = vmatpush1.msra.mxu0 0.0
    %1391 = vmatprep.subr.mxu0 0.0
    %1392 = vmatpush1.msra.mxu0 0.0
    %1393 = vmatprep.subr.mxu0 0.0
    %1394 = vmatpush1.msra.mxu0 0.0
    %1395 = vmatprep.subr.mxu0 0.0
    %1396 = vmatpush1.msra.mxu0 0.0
    %1397 = vmatprep.subr.mxu0 0.0
    %1398 = vmatpush1.msra.mxu0 0.0
    %1399 = vmatprep.subr.mxu0 0.0
    %1400 = vmatpush1.msra.mxu0 0.0
    %1401 = vmatprep.subr.mxu0 0.0
    %1402 = vmatpush1.msra.mxu0 0.0
    %1403 = vmatprep.subr.mxu0 0.0
    %1404 = vmatpush1.msra.mxu0 0.0
    %1405 = vmatprep.subr.mxu0 0.0
    %1406 = vmatpush1.msra.mxu0 0.0
    %1407 = vmatprep.subr.mxu0 0.0
    %1408 = vmatpush1.msra.mxu0 0.0
    %1409 = vmatprep.mubr.f32.mxu0 0.0
    %1410 = vmatmul.mubr.f32.gmra.mrb[0].mxu0 %v444
    %v1411 = vpop.f32.mrb[0].mxu0
    %v1412 = vadd.f32 0.0, %v1411
    %v1413 = vpop.f32.mrb[0].mxu0
    %1414 = vdwg.mxu0
    %v1417 = vrot.slane %v1130, 4
    %v1418 = vrot.slane %v1412, 4
    %vm1421 = vcmask 1043456
    %v1422 = vsel %vm1421, %v513, %v1417
    %v1423 = vsel %vm1421, %v841, %v1418
    %v1424 = vld [vmem:[#allocation13] sm:$0xff]
    %v1425 = vld [vmem:[#allocation13 + $0x8] sm:$0xff]
    %v1426 = vld [vmem:[#allocation13 + $0x10] sm:$0xff]
    %v1427 = vld [vmem:[#allocation13 + $0x18] sm:$0xff]
    %v1428 = vld [vmem:[#allocation13 + $0x20] sm:$0xff]
    %v1429 = vld [vmem:[#allocation13 + $0x28] sm:$0xff]
    %v1430 = vld [vmem:[#allocation13 + $0x30] sm:$0xff]
    %v1431 = vld [vmem:[#allocation13 + $0x38] sm:$0xff]
    %v1432 = vld [vmem:[#allocation13 + $0x40] sm:$0xff]
    %v1433 = vld [vmem:[#allocation13 + $0x48] sm:$0xff]
    %v1434 = vld [vmem:[#allocation13 + $0x50] sm:$0xff]
    %v1435 = vld [vmem:[#allocation13 + $0x58] sm:$0xff]
    %v1436 = vld [vmem:[#allocation13 + $0x60] sm:$0xff]
    %v1437 = vld [vmem:[#allocation13 + $0x68] sm:$0xff]
    %v1438 = vld [vmem:[#allocation13 + $0x70] sm:$0xff]
    %v1439 = vld [vmem:[#allocation13 + $0x78] sm:$0xff]
    %v1440 = vld [vmem:[#allocation13 + $0x80] sm:$0xff]
    %v1441 = vld [vmem:[#allocation13 + $0x88] sm:$0xff]
    %v1442 = vld [vmem:[#allocation13 + $0x90] sm:$0xff]
    %v1443 = vld [vmem:[#allocation13 + $0x98] sm:$0xff]
    %v1444 = vld [vmem:[#allocation13 + $0xa0] sm:$0xff]
    %v1445 = vld [vmem:[#allocation13 + $0xa8] sm:$0xff]
    %v1446 = vld [vmem:[#allocation13 + $0xb0] sm:$0xff]
    %v1447 = vld [vmem:[#allocation13 + $0xb8] sm:$0xff]
    %v1448 = vld [vmem:[#allocation13 + $0xc0] sm:$0xff]
    %v1449 = vld [vmem:[#allocation13 + $0xc8] sm:$0xff]
    %v1450 = vld [vmem:[#allocation13 + $0xd0] sm:$0xff]
    %v1451 = vld [vmem:[#allocation13 + $0xd8] sm:$0xff]
    %v1452 = vld [vmem:[#allocation13 + $0xe0] sm:$0xff]
    %v1453 = vld [vmem:[#allocation13 + $0xe8] sm:$0xff]
    %v1454 = vld [vmem:[#allocation13 + $0xf0] sm:$0xff]
    %v1455 = vld [vmem:[#allocation13 + $0xf8] sm:$0xff]
    %v1456 = vld [vmem:[#allocation15] sm:$0x1]
    %v1458 = vlaneseq
    %v1459 = vshrl.u32 %v1458, 7
    %v1460 = vsub.s32 0, %v1459
    %v1461 = vrot.slane %v1456, %v1460
    %1463 = vmatprep.subr.mxu0 0.0
    %1464 = vmatpush1.msra.mxu0 %v1424
    %1465 = vmatprep.subr.mxu0 0.0
    %1466 = vmatpush1.msra.mxu0 %v1425
    %1467 = vmatprep.subr.mxu0 0.0
    %1468 = vmatpush1.msra.mxu0 %v1426
    %1469 = vmatprep.subr.mxu0 0.0
    %1470 = vmatpush1.msra.mxu0 %v1427
    %1471 = vmatprep.subr.mxu0 0.0
    %1472 = vmatpush1.msra.mxu0 %v1428
    %1473 = vmatprep.subr.mxu0 0.0
    %1474 = vmatpush1.msra.mxu0 %v1429
    %1475 = vmatprep.subr.mxu0 0.0
    %1476 = vmatpush1.msra.mxu0 %v1430
    %1477 = vmatprep.subr.mxu0 0.0
    %1478 = vmatpush1.msra.mxu0 %v1431
    %1479 = vmatprep.subr.mxu0 0.0
    %1480 = vmatpush1.msra.mxu0 %v1432
    %1481 = vmatprep.subr.mxu0 0.0
    %1482 = vmatpush1.msra.mxu0 %v1433
    %1483 = vmatprep.subr.mxu0 0.0
    %1484 = vmatpush1.msra.mxu0 %v1434
    %1485 = vmatprep.subr.mxu0 0.0
    %1486 = vmatpush1.msra.mxu0 %v1435
    %1487 = vmatprep.subr.mxu0 0.0
    %1488 = vmatpush1.msra.mxu0 %v1436
    %1489 = vmatprep.subr.mxu0 0.0
    %1490 = vmatpush1.msra.mxu0 %v1437
    %1491 = vmatprep.subr.mxu0 0.0
    %1492 = vmatpush1.msra.mxu0 %v1438
    %1493 = vmatprep.subr.mxu0 0.0
    %1494 = vmatpush1.msra.mxu0 %v1439
    %1495 = vmatprep.subr.mxu0 0.0
    %1496 = vmatpush1.msra.mxu0 %v1440
    %1497 = vmatprep.subr.mxu0 0.0
    %1498 = vmatpush1.msra.mxu0 %v1441
    %1499 = vmatprep.subr.mxu0 0.0
    %1500 = vmatpush1.msra.mxu0 %v1442
    %1501 = vmatprep.subr.mxu0 0.0
    %1502 = vmatpush1.msra.mxu0 %v1443
    %1503 = vmatprep.subr.mxu0 0.0
    %1504 = vmatpush1.msra.mxu0 %v1444
    %1505 = vmatprep.subr.mxu0 0.0
    %1506 = vmatpush1.msra.mxu0 %v1445
    %1507 = vmatprep.subr.mxu0 0.0
    %1508 = vmatpush1.msra.mxu0 %v1446
    %1509 = vmatprep.subr.mxu0 0.0
    %1510 = vmatpush1.msra.mxu0 %v1447
    %1511 = vmatprep.subr.mxu0 0.0
    %1512 = vmatpush1.msra.mxu0 %v1448
    %1513 = vmatprep.subr.mxu0 0.0
    %1514 = vmatpush1.msra.mxu0 %v1449
    %1515 = vmatprep.subr.mxu0 0.0
    %1516 = vmatpush1.msra.mxu0 %v1450
    %1517 = vmatprep.subr.mxu0 0.0
    %1518 = vmatpush1.msra.mxu0 %v1451
    %1519 = vmatprep.subr.mxu0 0.0
    %1520 = vmatpush1.msra.mxu0 %v1452
    %1521 = vmatprep.subr.mxu0 0.0
    %1522 = vmatpush1.msra.mxu0 %v1453
    %1523 = vmatprep.subr.mxu0 0.0
    %1524 = vmatpush1.msra.mxu0 %v1454
    %1525 = vmatprep.subr.mxu0 0.0
    %1526 = vmatpush1.msra.mxu0 %v1455
    %1527 = vmatprep.mubr.f32.mxu0 %v1423
    %1528 = vmatmul.mubr.f32.gmra.mrb[0].mxu0 %v1422
    %v1529 = vpop.f32.mrb[0].mxu0
    %v1530 = vadd.f32 %v1461, %v1529
    %v1531 = vpop.f32.mrb[0].mxu0
    %1532 = vdwg.mxu0
    %v1533 = vmin.f32 %v1530, 0.0
    %v1534 = vmul.f32 %v1533, 1.442695
    %v1535 = vpow.pop %v1534
    %v1536 = vsub.f32 %v1535, 1.0
    %vm1537 = vcmp.gt.f32.partialorder %v1530, 0.0
    %v1538 = vsel %vm1537, %v1530, %v1536
    %v1539 = vld [vmem:[#allocation16] sm:$0xff]
    %v1540 = vld [vmem:[#allocation16 + $0x8] sm:$0xff]
    %v1541 = vld [vmem:[#allocation16 + $0x10] sm:$0xff]
    %v1542 = vld [vmem:[#allocation16 + $0x18] sm:$0xff]
    %v1543 = vld [vmem:[#allocation16 + $0x20] sm:$0xff]
    %v1544 = vld [vmem:[#allocation16 + $0x28] sm:$0xff]
    %v1545 = vld [vmem:[#allocation16 + $0x30] sm:$0xff]
    %v1546 = vld [vmem:[#allocation16 + $0x38] sm:$0xff]
    %v1547 = vld [vmem:[#allocation16 + $0x40] sm:$0xff]
    %v1548 = vld [vmem:[#allocation16 + $0x48] sm:$0xff]
    %v1549 = vld [vmem:[#allocation16 + $0x50] sm:$0xff]
    %v1550 = vld [vmem:[#allocation16 + $0x58] sm:$0xff]
    %v1551 = vld [vmem:[#allocation16 + $0x60] sm:$0xff]
    %v1552 = vld [vmem:[#allocation16 + $0x68] sm:$0xff]
    %v1553 = vld [vmem:[#allocation16 + $0x70] sm:$0xff]
    %v1554 = vld [vmem:[#allocation16 + $0x78] sm:$0xff]
    %v1555 = vld [vmem:[%s14] sm:$0x1]
    %v1557 = vlaneseq
    %v1558 = vshrl.u32 %v1557, 7
    %v1559 = vsub.s32 0, %v1558
    %v1560 = vrot.slane %v1555, %v1559
    %1562 = vmatprep.subr.mxu0 0.0
    %1563 = vmatpush1.msra.mxu0 %v1539
    %1564 = vmatprep.subr.mxu0 0.0
    %1565 = vmatpush1.msra.mxu0 %v1540
    %1566 = vmatprep.subr.mxu0 0.0
    %1567 = vmatpush1.msra.mxu0 %v1541
    %1568 = vmatprep.subr.mxu0 0.0
    %1569 = vmatpush1.msra.mxu0 %v1542
    %1570 = vmatprep.subr.mxu0 0.0
    %1571 = vmatpush1.msra.mxu0 %v1543
    %1572 = vmatprep.subr.mxu0 0.0
    %1573 = vmatpush1.msra.mxu0 %v1544
    %1574 = vmatprep.subr.mxu0 0.0
    %1575 = vmatpush1.msra.mxu0 %v1545
    %1576 = vmatprep.subr.mxu0 0.0
    %1577 = vmatpush1.msra.mxu0 %v1546
    %1578 = vmatprep.subr.mxu0 0.0
    %1579 = vmatpush1.msra.mxu0 %v1547
    %1580 = vmatprep.subr.mxu0 0.0
    %1581 = vmatpush1.msra.mxu0 %v1548
    %1582 = vmatprep.subr.mxu0 0.0
    %1583 = vmatpush1.msra.mxu0 %v1549
    %1584 = vmatprep.subr.mxu0 0.0
    %1585 = vmatpush1.msra.mxu0 %v1550
    %1586 = vmatprep.subr.mxu0 0.0
    %1587 = vmatpush1.msra.mxu0 %v1551
    %1588 = vmatprep.subr.mxu0 0.0
    %1589 = vmatpush1.msra.mxu0 %v1552
    %1590 = vmatprep.subr.mxu0 0.0
    %1591 = vmatpush1.msra.mxu0 %v1553
    %1592 = vmatprep.subr.mxu0 0.0
    %1593 = vmatpush1.msra.mxu0 %v1554
    %1594 = vmatprep.subr.mxu0 0.0
    %1595 = vmatpush1.msra.mxu0 0.0
    %1596 = vmatprep.subr.mxu0 0.0
    %1597 = vmatpush1.msra.mxu0 0.0
    %1598 = vmatprep.subr.mxu0 0.0
    %1599 = vmatpush1.msra.mxu0 0.0
    %1600 = vmatprep.subr.mxu0 0.0
    %1601 = vmatpush1.msra.mxu0 0.0
    %1602 = vmatprep.subr.mxu0 0.0
    %1603 = vmatpush1.msra.mxu0 0.0
    %1604 = vmatprep.subr.mxu0 0.0
    %1605 = vmatpush1.msra.mxu0 0.0
    %1606 = vmatprep.subr.mxu0 0.0
    %1607 = vmatpush1.msra.mxu0 0.0
    %1608 = vmatprep.subr.mxu0 0.0
    %1609 = vmatpush1.msra.mxu0 0.0
    %1610 = vmatprep.subr.mxu0 0.0
    %1611 = vmatpush1.msra.mxu0 0.0
    %1612 = vmatprep.subr.mxu0 0.0
    %1613 = vmatpush1.msra.mxu0 0.0
    %1614 = vmatprep.subr.mxu0 0.0
    %1615 = vmatpush1.msra.mxu0 0.0
    %1616 = vmatprep.subr.mxu0 0.0
    %1617 = vmatpush1.msra.mxu0 0.0
    %1618 = vmatprep.subr.mxu0 0.0
    %1619 = vmatpush1.msra.mxu0 0.0
    %1620 = vmatprep.subr.mxu0 0.0
    %1621 = vmatpush1.msra.mxu0 0.0
    %1622 = vmatprep.subr.mxu0 0.0
    %1623 = vmatpush1.msra.mxu0 0.0
    %1624 = vmatprep.subr.mxu0 0.0
    %1625 = vmatpush1.msra.mxu0 0.0
    %1626 = vmatprep.mubr.f32.mxu0 0.0
    %1627 = vmatmul.mubr.f32.gmra.mrb[0].mxu0 %v1538
    %v1628 = vpop.f32.mrb[0].mxu0
    %v1629 = vadd.f32 %v1560, %v1628
    %v1630 = vpop.f32.mrb[0].mxu0
    %1631 = vdwg.mxu0
    %1632 = vst [vmem:[%s15] sm:$0xff] %v1629
    // Predicated region
    $region102: #{model_forward.1} parent=1 // pred_check
      _
    $region103: #{model_forward.1} parent=1 // pred_check_branch
      %1634 = sbr.rel (0) target = $region105
    $region104: #{model_forward.1} parent=1 // pred_region
      _
    $region105: #{model_forward.1} parent=1 // pred_fallthru
      _
    // Predicated region
    $region106: #{model_forward.1} parent=1 // pred_check
      _
    $region107: #{model_forward.1} parent=1 // pred_check_branch
      %1636 = sbr.rel (0) target = $region109
    $region108: #{model_forward.1} parent=1 // pred_region
      _
    $region109: #{model_forward.1} parent=1 // pred_fallthru
      _
    %1637 = vsyncpa [#allocation3], 1
    %1638 = vsyncpa [#allocation5], 1
    %1639 = vsyncpa [#allocation8], 1
    %1640 = vsyncpa [#allocation11], 1
    %1641 = vsyncpa [#allocation14], 1
    %1642 = vsyncpa [#allocation17], 1

</llo_original>
